<compile_context>
chip_gen: v5e
topology: v5e:2x2
jax: 0.10.0
libtpu: 0.0.40
codegen_flags: <defaults>
</compile_context>

<pallas_src>
import math

import jax
import jax.numpy as jnp
from jax.experimental import pallas as pl
from jax.experimental.pallas import tpu as pltpu

# Safe on every generation: raises the v5e (16 MiB) / v6e (32 MiB) scoped-VMEM defaults
# while staying well under v7x's 64 MiB physical VMEM.
_VMEM_LIMIT_BYTES = 48 * 1024 * 1024


def _round_up(x, m):
    return (x + m - 1) // m * m


def _pick_tile(pref, dim):
    # Largest multiple of 128 that is <= pref and divides `dim` (dim % 128 == 0).
    t = max((min(pref, dim) // 128) * 128, 128)
    while dim % t:
        t -= 128
    return t


# ---------------------------------------------------------------------------
# Stage 1: W2 = weight.T = Wm @ x.T + exp(Wl @ x.T) * eps[None, :]
# ---------------------------------------------------------------------------
def _weight_kernel(wm_ref, wl_ref, xt_ref, eps_ref, w2_ref, mean_acc, lstd_acc):
    @pl.when(pl.program_id(2) == 0)
    def _init():
        mean_acc[...] = jnp.zeros_like(mean_acc)
        lstd_acc[...] = jnp.zeros_like(lstd_acc)

    xt = xt_ref[...]
    mean_acc[...] += jnp.dot(wm_ref[...], xt, preferred_element_type=jnp.float32)
    lstd_acc[...] += jnp.dot(wl_ref[...], xt, preferred_element_type=jnp.float32)

    @pl.when(pl.program_id(2) == pl.num_programs(2) - 1)
    def _finalize():
        eps_row = eps_ref[...]                      # (1, tn) f32, lane-broadcast
        w2 = mean_acc[...] + jnp.exp(lstd_acc[...]) * eps_row   # f32 epilogue
        w2_ref[...] = w2.astype(w2_ref.dtype)


# ---------------------------------------------------------------------------
# Stage 2: out = x @ W2   (standard tiled, k-accumulated matmul)
# ---------------------------------------------------------------------------
def _matmul_kernel(x_ref, w2_ref, o_ref, acc_ref):
    @pl.when(pl.program_id(2) == 0)
    def _init():
        acc_ref[...] = jnp.zeros_like(acc_ref)

    acc_ref[...] += jnp.dot(x_ref[...], w2_ref[...],
                            preferred_element_type=jnp.float32)

    @pl.when(pl.program_id(2) == pl.num_programs(2) - 1)
    def _finalize():
        o_ref[...] = acc_ref[...].astype(o_ref.dtype)


def fast_gaussian_linear(x, mean_weight, log_stddev_weight, eps, *,
                         compute_dtype=jnp.bfloat16,
                         block_m=256, block_n=256, block_k=512):
    """Pallas-TPU forward of FastGaussianLinear.

    The torch forward only broadcasts when batch == in_features == out_features.
    MXU operands run in `compute_dtype` (default bf16) with f32 accumulation and an
    f32 exp/eps epilogue; pass compute_dtype=jnp.float32 for a full-precision path.
    """
    out_dtype = x.dtype
    n, in_f = x.shape
    out_f, in_f2 = mean_weight.shape
    assert n == in_f == in_f2 == out_f, (
        "FastGaussianLinear.forward only broadcasts when "
        "batch == in_features == out_features")
    assert eps.shape == (out_f,)

    # Pad to a multiple of 128 so every block is lane/sublane aligned.  Zero padding
    # is mathematically neutral: padded features of x are zero, so the (eps-only)
    # padded rows of W2 never contribute to the valid output region.
    npad = _round_up(n, 128)
    pad = npad - n
    if pad:
        x = jnp.pad(x, ((0, pad), (0, pad)))
        mean_weight = jnp.pad(mean_weight, ((0, pad), (0, pad)))
        log_stddev_weight = jnp.pad(log_stddev_weight, ((0, pad), (0, pad)))
        eps = jnp.pad(eps, (0, pad))

    tm = _pick_tile(block_m, npad)
    tn = _pick_tile(block_n, npad)
    tk = _pick_tile(block_k, npad)
    grid = (npad // tm, npad // tn, npad // tk)

    x_c = x.astype(compute_dtype)
    xt_c = x_c.T                                       # one-time O(N^2) transpose
    wm_c = mean_weight.astype(compute_dtype)
    wl_c = log_stddev_weight.astype(compute_dtype)
    eps_row = eps.reshape(1, npad).astype(jnp.float32)  # epilogue stays f32

    cbytes = jnp.dtype(compute_dtype).itemsize
    cparams = pltpu.CompilerParams(
        dimension_semantics=("parallel", "parallel", "arbitrary"),
        vmem_limit_bytes=_VMEM_LIMIT_BYTES)

    # ---- stage 1: W2 = weight.T ------------------------------------------------
    w2 = pl.pallas_call(
        _weight_kernel,
        out_shape=jax.ShapeDtypeStruct((npad, npad), compute_dtype),
        grid=grid,
        in_specs=[
            pl.BlockSpec((tm, tk), lambda i, j, k: (i, k)),   # Wm
            pl.BlockSpec((tm, tk), lambda i, j, k: (i, k)),   # Wl
            pl.BlockSpec((tk, tn), lambda i, j, k: (k, j)),   # x.T
            pl.BlockSpec((1, tn), lambda i, j, k: (0, j)),    # eps as a row vector
        ],
        out_specs=pl.BlockSpec((tm, tn), lambda i, j, k: (i, j)),
        scratch_shapes=[pltpu.VMEM((tm, tn), jnp.float32),
                        pltpu.VMEM((tm, tn), jnp.float32)],
        compiler_params=cparams,
        cost_estimate=pl.CostEstimate(
            flops=4 * npad ** 3,
            transcendentals=npad * npad,
            bytes_accessed=4 * npad * npad * cbytes),
    )(wm_c, wl_c, xt_c, eps_row)

    # ---- stage 2: out = x @ W2 ---------------------------------------------------
    # NOTE: on v5e a single fused call that keeps the W2 j-slab in VMEM scratch would
    # avoid this extra N^2 HBM round-trip; the two-call structure is fine on v6e/v7x.
    out = pl.pallas_call(
        _matmul_kernel,
        out_shape=jax.ShapeDtypeStruct((npad, npad), out_dtype),
        grid=grid,
        in_specs=[
            pl.BlockSpec((tm, tk), lambda i, j, k: (i, k)),   # x
            pl.BlockSpec((tk, tn), lambda i, j, k: (k, j)),   # W2
        ],
        out_specs=pl.BlockSpec((tm, tn), lambda i, j, k: (i, j)),
        scratch_shapes=[pltpu.VMEM((tm, tn), jnp.float32)],
        compiler_params=cparams,
        cost_estimate=pl.CostEstimate(
            flops=2 * npad ** 3,
            transcendentals=0,
            bytes_accessed=(2 * cbytes + jnp.dtype(out_dtype).itemsize)
            * npad * npad),
    )(x_c, w2)

    if pad:
        out = out[:n, :n]
    return out


if __name__ == "__main__":
    # batch = in_features = out_features (the torch forward requires them equal).
    N = 200                      # deliberately NOT a multiple of 128 -> exercises padding
    mean_init, std_init = 0.05, 0.8

    key = jax.random.PRNGKey(0)
    k_eps, k_x = jax.random.split(key)

    mean_weight = jnp.full((N, N), mean_init, jnp.float32)
    log_stddev_weight = jnp.full((N, N), math.log(std_init), jnp.float32)
    eps = jax.random.normal(k_eps, (N,), jnp.float32)          # torch randn buffer
    x = 0.1 * jax.random.normal(k_x, (N, N), jnp.float32)

    @jax.jit
    def run(x_, wm_, wl_, eps_):
        # small blocks so the 256-padded problem still exercises a 2x2x2 grid
        return fast_gaussian_linear(x_, wm_, wl_, eps_,
                                    block_m=128, block_n=128, block_k=128)

    out = jax.block_until_ready(run(x, mean_weight, log_stddev_weight, eps))

    # --- pure f32 reference of the exact torch forward -------------------------
    mean_ref = x @ mean_weight.T
    stddev_ref = jnp.exp(x @ log_stddev_weight.T)
    weight_ref = mean_ref + stddev_ref * eps[:, None]
    ref_f32 = x @ weight_ref.T

    # --- reference that mirrors the kernel's bf16 casts (validates kernel math) --
    cd = jnp.bfloat16
    xc = x.astype(cd)
    mt = jnp.dot(mean_weight.astype(cd), xc.T, preferred_element_type=jnp.float32)
    lt = jnp.dot(log_stddev_weight.astype(cd), xc.T, preferred_element_type=jnp.float32)
    w2_ref = (mt + jnp.exp(lt) * eps[None, :].astype(jnp.float32)).astype(cd)
    ref_mixed = jnp.dot(xc, w2_ref, preferred_element_type=jnp.float32).astype(jnp.float32)

    def rel_err(a, b):
        return float(jnp.max(jnp.abs(a.astype(jnp.float32) - b)) /
                     jnp.maximum(jnp.max(jnp.abs(b)), 1e-6))

    assert out.shape == (N, N)
    err_mixed = rel_err(out, ref_mixed)   # tiling/epilogue/padding correctness
    err_f32 = rel_err(out, ref_f32)       # mixed precision vs exact f32 forward
    assert err_mixed < 1e-2, f"kernel vs cast-matched reference mismatch: {err_mixed}"
    assert err_f32 < 5e-2, f"kernel vs f32 reference mismatch: {err_f32}"
    print("KERNEL_OK")
</pallas_src>

<mosaic_0001>
module attributes {stable_mosaic.version = 11 : i64} {
  func.func @_matmul_kernel(%arg0: i32, %arg1: i32, %arg2: i32, %arg3: memref<128x128xbf16, #tpu.memory_space<vmem>>, %arg4: memref<128x128xbf16, #tpu.memory_space<vmem>>, %arg5: memref<128x128xf32, #tpu.memory_space<vmem>>, %arg6: memref<128x128xf32, #tpu.memory_space<vmem>>) attributes {dimension_semantics = [#tpu.dimension_semantics<parallel>, #tpu.dimension_semantics<parallel>, #tpu.dimension_semantics<arbitrary>], iteration_bounds = array<i64: 2, 2, 2>, scalar_prefetch = 0 : i64, scratch_operands = 1 : i64, tpu.core_type = #tpu.core_type<tc>, window_params = [{transform_indices = @transform_0, window_bounds = array<i64: 128, 128>}, {transform_indices = @transform_1, window_bounds = array<i64: 128, 128>}, {transform_indices = @transform_2, window_bounds = array<i64: 128, 128>}]} {
    %c0_i32 = arith.constant 0 : i32
    %0 = arith.cmpi eq, %arg2, %c0_i32 : i32
    %1 = arith.extui %0 : i1 to i32
    %c0_i32_0 = arith.constant 0 : i32
    %2 = arith.cmpi ne, %1, %c0_i32_0 : i32
    scf.if %2 {
      %cst_9 = arith.constant 0.000000e+00 : f32
      %12 = vector.broadcast %cst_9 : f32 to vector<128x128xf32>
      %c0_10 = arith.constant 0 : index
      %c0_11 = arith.constant 0 : index
      %13 = vector.load %arg6[%c0_10, %c0_11] : memref<128x128xf32, #tpu.memory_space<vmem>>, vector<128x128xf32>
      tpu.vector_store %arg6[%c0_10, %c0_11], %12 {strides = array<i32>} : memref<128x128xf32, #tpu.memory_space<vmem>>, vector<128x128xf32>,
    } else {
    }
    %c0 = arith.constant 0 : index
    %c0_1 = arith.constant 0 : index
    %3 = vector.load %arg6[%c0, %c0_1] : memref<128x128xf32, #tpu.memory_space<vmem>>, vector<128x128xf32>
    %c0_2 = arith.constant 0 : index
    %c0_3 = arith.constant 0 : index
    %4 = vector.load %arg3[%c0_2, %c0_3] : memref<128x128xbf16, #tpu.memory_space<vmem>>, vector<128x128xbf16>
    %c0_4 = arith.constant 0 : index
    %c0_5 = arith.constant 0 : index
    %5 = vector.load %arg4[%c0_4, %c0_5] : memref<128x128xbf16, #tpu.memory_space<vmem>>, vector<128x128xbf16>
    %cst = arith.constant dense<0.000000e+00> : vector<128x128xf32>
    %6 = tpu.matmul %4, %5, %cst {dimension_numbers = #tpu.dot_dimension_numbers<[1], [0], [0], [1], [0, 0, 1, 1], [], []>} : vector<128x128xbf16>, vector<128x128xbf16>, vector<128x128xf32> -> vector<128x128xf32>
    %7 = arith.addf %3, %6 : vector<128x128xf32>
    %c0_6 = arith.constant 0 : index
    %c0_7 = arith.constant 0 : index
    %8 = vector.load %arg6[%c0_6, %c0_7] : memref<128x128xf32, #tpu.memory_space<vmem>>, vector<128x128xf32>
    tpu.vector_store %arg6[%c0_6, %c0_7], %7 {strides = array<i32>} : memref<128x128xf32, #tpu.memory_space<vmem>>, vector<128x128xf32>,
    %c1_i32 = arith.constant 1 : i32
    %9 = arith.cmpi eq, %arg2, %c1_i32 : i32
    %10 = arith.extui %9 : i1 to i32
    %c0_i32_8 = arith.constant 0 : i32
    %11 = arith.cmpi ne, %10, %c0_i32_8 : i32
    scf.if %11 {
      %c0_9 = arith.constant 0 : index
      %c0_10 = arith.constant 0 : index
      %12 = vector.load %arg6[%c0_9, %c0_10] : memref<128x128xf32, #tpu.memory_space<vmem>>, vector<128x128xf32>
      %c0_11 = arith.constant 0 : index
      %c0_12 = arith.constant 0 : index
      %13 = vector.load %arg5[%c0_11, %c0_12] : memref<128x128xf32, #tpu.memory_space<vmem>>, vector<128x128xf32>
      tpu.vector_store %arg5[%c0_11, %c0_12], %12 {strides = array<i32>} : memref<128x128xf32, #tpu.memory_space<vmem>>, vector<128x128xf32>,
    } else {
    }
    return
  }
  func.func @transform_0(%arg0: i32, %arg1: i32, %arg2: i32) -> (i32, i32) {
    %c0_i32 = arith.constant 0 : i32
    return %arg0, %arg2 : i32, i32
  }
  func.func @transform_1(%arg0: i32, %arg1: i32, %arg2: i32) -> (i32, i32) {
    %c0_i32 = arith.constant 0 : i32
    return %arg2, %arg1 : i32, i32
  }
  func.func @transform_2(%arg0: i32, %arg1: i32, %arg2: i32) -> (i32, i32) {
    %c0_i32 = arith.constant 0 : i32
    return %arg0, %arg1 : i32, i32
  }
}

module attributes {stable_mosaic.version = 11 : i64} {
  func.func @_weight_kernel(%arg0: i32, %arg1: i32, %arg2: i32, %arg3: memref<128x128xbf16, #tpu.memory_space<vmem>>, %arg4: memref<128x128xbf16, #tpu.memory_space<vmem>>, %arg5: memref<128x128xbf16, #tpu.memory_space<vmem>>, %arg6: memref<1x128xf32, #tpu.memory_space<vmem>>, %arg7: memref<128x128xbf16, #tpu.memory_space<vmem>>, %arg8: memref<128x128xf32, #tpu.memory_space<vmem>>, %arg9: memref<128x128xf32, #tpu.memory_space<vmem>>) attributes {dimension_semantics = [#tpu.dimension_semantics<parallel>, #tpu.dimension_semantics<parallel>, #tpu.dimension_semantics<arbitrary>], iteration_bounds = array<i64: 2, 2, 2>, scalar_prefetch = 0 : i64, scratch_operands = 2 : i64, tpu.core_type = #tpu.core_type<tc>, window_params = [{transform_indices = @transform_0, window_bounds = array<i64: 128, 128>}, {transform_indices = @transform_1, window_bounds = array<i64: 128, 128>}, {transform_indices = @transform_2, window_bounds = array<i64: 128, 128>}, {transform_indices = @transform_3, window_bounds = array<i64: 1, 128>}, {transform_indices = @transform_4, window_bounds = array<i64: 128, 128>}]} {
    %c0_i32 = arith.constant 0 : i32
    %0 = arith.cmpi eq, %arg2, %c0_i32 : i32
    %1 = arith.extui %0 : i1 to i32
    %c0_i32_0 = arith.constant 0 : i32
    %2 = arith.cmpi ne, %1, %c0_i32_0 : i32
    scf.if %2 {
      %cst_16 = arith.constant 0.000000e+00 : f32
      %17 = vector.broadcast %cst_16 : f32 to vector<128x128xf32>
      %c0_17 = arith.constant 0 : index
      %c0_18 = arith.constant 0 : index
      %18 = vector.load %arg8[%c0_17, %c0_18] : memref<128x128xf32, #tpu.memory_space<vmem>>, vector<128x128xf32>
      tpu.vector_store %arg8[%c0_17, %c0_18], %17 {strides = array<i32>} : memref<128x128xf32, #tpu.memory_space<vmem>>, vector<128x128xf32>,
      %cst_19 = arith.constant 0.000000e+00 : f32
      %19 = vector.broadcast %cst_19 : f32 to vector<128x128xf32>
      %c0_20 = arith.constant 0 : index
      %c0_21 = arith.constant 0 : index
      %20 = vector.load %arg9[%c0_20, %c0_21] : memref<128x128xf32, #tpu.memory_space<vmem>>, vector<128x128xf32>
      tpu.vector_store %arg9[%c0_20, %c0_21], %19 {strides = array<i32>} : memref<128x128xf32, #tpu.memory_space<vmem>>, vector<128x128xf32>,
    } else {
    }
    %c0 = arith.constant 0 : index
    %c0_1 = arith.constant 0 : index
    %3 = vector.load %arg5[%c0, %c0_1] : memref<128x128xbf16, #tpu.memory_space<vmem>>, vector<128x128xbf16>
    %c0_2 = arith.constant 0 : index
    %c0_3 = arith.constant 0 : index
    %4 = vector.load %arg8[%c0_2, %c0_3] : memref<128x128xf32, #tpu.memory_space<vmem>>, vector<128x128xf32>
    %c0_4 = arith.constant 0 : index
    %c0_5 = arith.constant 0 : index
    %5 = vector.load %arg3[%c0_4, %c0_5] : memref<128x128xbf16, #tpu.memory_space<vmem>>, vector<128x128xbf16>
    %cst = arith.constant dense<0.000000e+00> : vector<128x128xf32>
    %6 = tpu.matmul %5, %3, %cst {dimension_numbers = #tpu.dot_dimension_numbers<[1], [0], [0], [1], [0, 0, 1, 1], [], []>} : vector<128x128xbf16>, vector<128x128xbf16>, vector<128x128xf32> -> vector<128x128xf32>
    %7 = arith.addf %4, %6 : vector<128x128xf32>
    %c0_6 = arith.constant 0 : index
    %c0_7 = arith.constant 0 : index
    %8 = vector.load %arg8[%c0_6, %c0_7] : memref<128x128xf32, #tpu.memory_space<vmem>>, vector<128x128xf32>
    tpu.vector_store %arg8[%c0_6, %c0_7], %7 {strides = array<i32>} : memref<128x128xf32, #tpu.memory_space<vmem>>, vector<128x128xf32>,
    %c0_8 = arith.constant 0 : index
    %c0_9 = arith.constant 0 : index
    %9 = vector.load %arg9[%c0_8, %c0_9] : memref<128x128xf32, #tpu.memory_space<vmem>>, vector<128x128xf32>
    %c0_10 = arith.constant 0 : index
    %c0_11 = arith.constant 0 : index
    %10 = vector.load %arg4[%c0_10, %c0_11] : memref<128x128xbf16, #tpu.memory_space<vmem>>, vector<128x128xbf16>
    %cst_12 = arith.constant dense<0.000000e+00> : vector<128x128xf32>
    %11 = tpu.matmul %10, %3, %cst_12 {dimension_numbers = #tpu.dot_dimension_numbers<[1], [0], [0], [1], [0, 0, 1, 1], [], []>} : vector<128x128xbf16>, vector<128x128xbf16>, vector<128x128xf32> -> vector<128x128xf32>
    %12 = arith.addf %9, %11 : vector<128x128xf32>
    %c0_13 = arith.constant 0 : index
    %c0_14 = arith.constant 0 : index
    %13 = vector.load %arg9[%c0_13, %c0_14] : memref<128x128xf32, #tpu.memory_space<vmem>>, vector<128x128xf32>
    tpu.vector_store %arg9[%c0_13, %c0_14], %12 {strides = array<i32>} : memref<128x128xf32, #tpu.memory_space<vmem>>, vector<128x128xf32>,
    %c1_i32 = arith.constant 1 : i32
    %14 = arith.cmpi eq, %arg2, %c1_i32 : i32
    %15 = arith.extui %14 : i1 to i32
    %c0_i32_15 = arith.constant 0 : i32
    %16 = arith.cmpi ne, %15, %c0_i32_15 : i32
    scf.if %16 {
      %c0_16 = arith.constant 0 : index
      %c0_17 = arith.constant 0 : index
      %17 = vector.load %arg6[%c0_16, %c0_17] : memref<1x128xf32, #tpu.memory_space<vmem>>, vector<1x128xf32>
      %c0_18 = arith.constant 0 : index
      %c0_19 = arith.constant 0 : index
      %18 = vector.load %arg8[%c0_18, %c0_19] : memref<128x128xf32, #tpu.memory_space<vmem>>, vector<128x128xf32>
      %c0_20 = arith.constant 0 : index
      %c0_21 = arith.constant 0 : index
      %19 = vector.load %arg9[%c0_20, %c0_21] : memref<128x128xf32, #tpu.memory_space<vmem>>, vector<128x128xf32>
      %20 = math.exp %19 : vector<128x128xf32>
      %21 = vector.broadcast %17 : vector<1x128xf32> to vector<128x128xf32>
      %22 = arith.mulf %20, %21 : vector<128x128xf32>
      %23 = arith.addf %18, %22 : vector<128x128xf32>
      %24 = arith.truncf %23 : vector<128x128xf32> to vector<128x128xbf16>
      %c0_22 = arith.constant 0 : index
      %c0_23 = arith.constant 0 : index
      %25 = vector.load %arg7[%c0_22, %c0_23] : memref<128x128xbf16, #tpu.memory_space<vmem>>, vector<128x128xbf16>
      tpu.vector_store %arg7[%c0_22, %c0_23], %24 {strides = array<i32>} : memref<128x128xbf16, #tpu.memory_space<vmem>>, vector<128x128xbf16>,
    } else {
    }
    return
  }
  func.func @transform_0(%arg0: i32, %arg1: i32, %arg2: i32) -> (i32, i32) {
    %c0_i32 = arith.constant 0 : i32
    return %arg0, %arg2 : i32, i32
  }
  func.func @transform_1(%arg0: i32, %arg1: i32, %arg2: i32) -> (i32, i32) {
    %c0_i32 = arith.constant 0 : i32
    return %arg0, %arg2 : i32, i32
  }
  func.func @transform_2(%arg0: i32, %arg1: i32, %arg2: i32) -> (i32, i32) {
    %c0_i32 = arith.constant 0 : i32
    return %arg2, %arg1 : i32, i32
  }
  func.func @transform_3(%arg0: i32, %arg1: i32, %arg2: i32) -> (i32, i32) {
    %c0_i32 = arith.constant 0 : i32
    %c0_i32_0 = arith.constant 0 : i32
    return %c0_i32, %arg1 : i32, i32
  }
  func.func @transform_4(%arg0: i32, %arg1: i32, %arg2: i32) -> (i32, i32) {
    %c0_i32 = arith.constant 0 : i32
    return %arg0, %arg1 : i32, i32
  }
}

</mosaic_0001>

<llo_original>
// kernel: run.3
$region0: #{run.3}
  #allocation0 [shape = 'u32[]', space=smem, size = 0x4, offset = 0x4, fixed_abs, tag = 'smem constant byte address 0x4 - core index']
  #allocation1 [shape = 'u32[72,128]{1,0:T(1,128)}', space=vmem, size = 0x9000, scoped, tag = 'internal scratch']
  #allocation2 [shape = 'f32[128,128]{1,0:T(8,128)}', space=vmem, size = 0x10000, scoped, tag = 'scratch operand']
  %s0 = inlined_call_operand.vmem [shape: bf16[256,256], index: 0, kind: input, shape index: {}]
  %s1 = inlined_call_operand.vmem [shape: bf16[256,256], index: 1, kind: input, shape index: {}]
  %s2 = inlined_call_operand.vmem [shape: f32[256,256], index: 2, kind: output, shape index: {}]
  %s3 = sld [smem:[#allocation0]]
  $region165: #{run.3} parent=0
    _
  %s5 = ssub.s32 1, %s3
  %s6 = scalar_select 0, %s5, %s3
  $region1: #{run.3} parent=0
    #allocation3 [shape = 'u8[65536]{0}', space=vmem, size = 0x10000, scoped, tag = 'input window, operand 0']
    #allocation4 [shape = 'u8[65536]{0}', space=vmem, size = 0x10000, scoped, tag = 'input window, operand 1']
    #allocation5 [shape = 'u8[131072]{0}', space=vmem, size = 0x20000, scoped, tag = 'output window, operand 0']
    loop: start=0, step=1, limit=10
    $region2: #{run.3} parent=1 // loop_pre_header
      _
    $region3: #{run.3} parent=1 // loop_header
      %s8 = sphi 0, %s12
      %p9 = scmp.ge.s32.totalorder %s8, 10
      %s15 = sphi 0, %s34
      %s16 = sphi 0, %s30
      %s17 = sphi 0, %s26
      %s18 = sphi 0, %s15
      %s19 = sphi 0, %s16
      %s20 = sphi 0, %s17
      %s21 = sphi 0, %s18
      %s22 = sphi 0, %s19
      %s23 = sphi 0, %s20
      %s39 = sphi 0, %s41
      %s42 = sphi 0, %s39
      %s43 = sphi 0, %s42
      %s59 = sphi 0, %s43
      %s67 = sphi 0, %s69
      %s70 = sphi 0, %s67
      %s71 = sphi 0, %s70
      %s87 = sphi 0, %s71
      %s95 = sphi 0, %s97
      %s98 = sphi 0, %s95
      %s99 = sphi 0, %s98
      %s115 = sphi 0, %s99
    $region4: #{run.3} parent=1 // loop_header_branch
      %11 = sbr.rel (%p9) target = $region8
    $region5: #{run.3} parent=1 // loop_body
      %s13 = ssub.s32 %s8, 1
      %s14 = ssub.s32 %s8, 2
      %s24 = sadd.s32 1, %s17
      %p25 = scmp.ge.s32.totalorder %s24, 2
      %s26 = scalar_select %p25, 0, %s24
      %s27 = sadd.s32 1, %s16
      %s28 = scalar_select %p25, %s27, %s16
      %p29 = scmp.ge.s32.totalorder %s28, 2
      %s30 = scalar_select %p29, 0, %s28
      %s31 = sadd.s32 1, %s15
      %s32 = scalar_select %p29, %s31, %s15
      %p33 = scmp.ge.s32.totalorder %s32, 2
      %s34 = scalar_select %p33, 0, %s32
      %s35 = ssub.s32 %s15, %s34
      %s36 = ssub.s32 %s17, %s26
      %s37 = sor.u32 %s35, %s36
      %p38 = scmp.eq.s32.totalorder %s37, 0
      %s40 = sadd.s32 %s39, 1
      %s41 = scalar_select %p38, %s39, %s40
      %p44 = pneg %p38
      %p45 = scmp.eq.s32.totalorder %s8, 7
      %p46 = por %p44, %p45
      %p47 = scmp.ne.s32.totalorder %s39, %s42
      %p48 = scmp.eq.s32.totalorder %s8, 0
      %p49 = por %p47, %p48
      %p50 = scmp.ne.s32.totalorder %s39, %s42
      %p51 = scmp.eq.s32.totalorder %s13, 7
      %p52 = por %p50, %p51
      %p53 = scmp.ne.s32.totalorder %s42, %s43
      %p54 = scmp.eq.s32.totalorder %s13, 0
      %p55 = por %p53, %p54
      %p56 = scmp.ne.s32.totalorder %s42, %s43
      %p57 = scmp.eq.s32.totalorder %s14, 7
      %p58 = por %p56, %p57
      %p60 = scmp.ne.s32.totalorder %s43, %s59
      %p61 = scmp.eq.s32.totalorder %s14, 0
      %p62 = por %p60, %p61
      %s63 = ssub.s32 %s17, %s26
      %s64 = ssub.s32 %s16, %s30
      %s65 = sor.u32 %s63, %s64
      %p66 = scmp.eq.s32.totalorder %s65, 0
      %s68 = sadd.s32 %s67, 1
      %s69 = scalar_select %p66, %s67, %s68
      %p72 = pneg %p66
      %p73 = scmp.eq.s32.totalorder %s8, 7
      %p74 = por %p72, %p73
      %p75 = scmp.ne.s32.totalorder %s67, %s70
      %p76 = scmp.eq.s32.totalorder %s8, 0
      %p77 = por %p75, %p76
      %p78 = scmp.ne.s32.totalorder %s67, %s70
      %p79 = scmp.eq.s32.totalorder %s13, 7
      %p80 = por %p78, %p79
      %p81 = scmp.ne.s32.totalorder %s70, %s71
      %p82 = scmp.eq.s32.totalorder %s13, 0
      %p83 = por %p81, %p82
      %p84 = scmp.ne.s32.totalorder %s70, %s71
      %p85 = scmp.eq.s32.totalorder %s14, 7
      %p86 = por %p84, %p85
      %p88 = scmp.ne.s32.totalorder %s71, %s87
      %p89 = scmp.eq.s32.totalorder %s14, 0
      %p90 = por %p88, %p89
      %s91 = ssub.s32 %s15, %s34
      %s92 = ssub.s32 %s16, %s30
      %s93 = sor.u32 %s91, %s92
      %p94 = scmp.eq.s32.totalorder %s93, 0
      %s96 = sadd.s32 %s95, 1
      %s97 = scalar_select %p94, %s95, %s96
      %p100 = pneg %p94
      %p101 = scmp.eq.s32.totalorder %s8, 7
      %p102 = por %p100, %p101
      %p103 = scmp.ne.s32.totalorder %s95, %s98
      %p104 = scmp.eq.s32.totalorder %s8, 0
      %p105 = por %p103, %p104
      %p106 = scmp.ne.s32.totalorder %s95, %s98
      %p107 = scmp.eq.s32.totalorder %s13, 7
      %p108 = por %p106, %p107
      %p109 = scmp.ne.s32.totalorder %s98, %s99
      %p110 = scmp.eq.s32.totalorder %s13, 0
      %p111 = por %p109, %p110
      %p112 = scmp.ne.s32.totalorder %s98, %s99
      %p113 = scmp.eq.s32.totalorder %s14, 7
      %p114 = por %p112, %p113
      %p116 = scmp.ne.s32.totalorder %s99, %s115
      %p117 = scmp.eq.s32.totalorder %s14, 0
      %p118 = por %p116, %p117
      %p119 = scmp.le.s32.totalorder 1, %s8
      %p120 = scmp.lt.s32.totalorder %s8, 9
      %p121 = pnand %p119, %p120
      %p122 = pneg %p121
      // Predicated region
      $region9: #{run.3} parent=5 // pred_check
        _
      $region10: #{run.3} parent=5 // pred_check_branch
        %124 = sbr.rel (%p121) target = $region12
      $region11: #{run.3} parent=5 // pred_region
        %s125 = ssub.s32 %s8, 1
      $region12: #{run.3} parent=5 // pred_fallthru
        _
      %p126 = scmp.lt.s32.totalorder %s8, 8
      // Predicated region
      $region13: #{run.3} parent=5 // pred_check
        %p127 = pneg %p126
      $region14: #{run.3} parent=5 // pred_check_branch
        %129 = sbr.rel (%p127) target = $region16
      $region15: #{run.3} parent=5 // pred_region
        // Predicated region
        $region17: #{run.3} parent=15 // pred_check
          %p130 = pneg %p49
        $region18: #{run.3} parent=15 // pred_check_branch
          %132 = sbr.rel (%p130) target = $region20
        $region19: #{run.3} parent=15 // pred_region
          %s133 = sand.u32 %s39, 1
          %s134 = sand.u32 %s39, 1
          %s135 = smul.addr %s134, 64
          %s136 = scalar_lea.vmem [#allocation3], %s135
          %s137 = smul.u32 16, %s15
          %s138 = smul.addr %s137, 2
          %s139 = sadd.s32 %s17, %s138
          %s140 = smul.addr %s139, 4
          %s141 = scalar_lea.vmem %s0, %s140
          // Predicated region
          $region21: #{run.3} parent=19 // pred_check
            _
          $region22: #{run.3} parent=19 // pred_check_branch
            %143 = sbr.rel (0) target = $region24
          $region23: #{run.3} parent=19 // pred_region
            // Predicated region
            $region25: #{run.3} parent=23 // pred_check
              _
            $region26: #{run.3} parent=23 // pred_check_branch
              %145 = sbr.rel target = $region28
            $region27: #{run.3} parent=23 // pred_region
              // Predicated region
              $region40: #{run.3} parent=27 // pred_check
                _
              $region41: #{run.3} parent=27 // pred_check_branch
                %191 = sbr.rel (0) target = $region43
              $region42: #{run.3} parent=27 // pred_region
                loop: start=0, step=1, limit=1
                $region44: #{run.3} parent=42 // loop_pre_header
                  _
                $region45: #{run.3} parent=42 // loop_header
                  %s193 = sphi 0, %s197
                  %p194 = scmp.ge.s32.totalorder %s193, 1
                  %s198 = sphi %s141, %s141
                  %s199 = sphi %s136, %s136
                $region46: #{run.3} parent=42 // loop_header_branch
                  %196 = sbr.rel (%p194) target = $region50
                $region47: #{run.3} parent=42 // loop_body
                  _
                $region48: #{run.3} parent=42 // loop_footer
                  %s197 = sadd.s32 1, %s193
                $region49: #{run.3} parent=42 // loop_footer_branch
                  %192 = sbr.rel target = $region45
                $region50: #{run.3} parent=42 // loop_exit
                  _
                %s201 = ssub.s32 16, 1
                loop: start=0, step=1, limit=1
                $region51: #{run.3} parent=42 // loop_pre_header
                  _
                $region52: #{run.3} parent=42 // loop_header
                  %s203 = sphi 0, %s207
                  %p204 = scmp.ge.s32.totalorder %s203, 1
                  %s208 = sphi %s141, %s141
                  %s209 = sphi %s136, %s136
                $region53: #{run.3} parent=42 // loop_header_branch
                  %206 = sbr.rel (%p204) target = $region57
                $region54: #{run.3} parent=42 // loop_body
                  %v210 = vld [vmem:[%s208] sm:%s201]
                  %211 = vst [vmem:[%s209] sm:%s201] %v210
                  %v212 = vld [vmem:[%s208 + $0x8] sm:%s201]
                  %213 = vst [vmem:[%s209 + $0x4] sm:%s201] %v212
                  %v214 = vld [vmem:[%s208 + $0x10] sm:%s201]
                  %215 = vst [vmem:[%s209 + $0x8] sm:%s201] %v214
                  %v216 = vld [vmem:[%s208 + $0x18] sm:%s201]
                  %217 = vst [vmem:[%s209 + $0xc] sm:%s201] %v216
                  %v218 = vld [vmem:[%s208 + $0x20] sm:%s201]
                  %219 = vst [vmem:[%s209 + $0x10] sm:%s201] %v218
                  %v220 = vld [vmem:[%s208 + $0x28] sm:%s201]
                  %221 = vst [vmem:[%s209 + $0x14] sm:%s201] %v220
                  %v222 = vld [vmem:[%s208 + $0x30] sm:%s201]
                  %223 = vst [vmem:[%s209 + $0x18] sm:%s201] %v222
                  %v224 = vld [vmem:[%s208 + $0x38] sm:%s201]
                  %225 = vst [vmem:[%s209 + $0x1c] sm:%s201] %v224
                  %v226 = vld [vmem:[%s208 + $0x40] sm:%s201]
                  %227 = vst [vmem:[%s209 + $0x20] sm:%s201] %v226
                  %v228 = vld [vmem:[%s208 + $0x48] sm:%s201]
                  %229 = vst [vmem:[%s209 + $0x24] sm:%s201] %v228
                  %v230 = vld [vmem:[%s208 + $0x50] sm:%s201]
                  %231 = vst [vmem:[%s209 + $0x28] sm:%s201] %v230
                  %v232 = vld [vmem:[%s208 + $0x58] sm:%s201]
                  %233 = vst [vmem:[%s209 + $0x2c] sm:%s201] %v232
                  %v234 = vld [vmem:[%s208 + $0x60] sm:%s201]
                  %235 = vst [vmem:[%s209 + $0x30] sm:%s201] %v234
                  %v236 = vld [vmem:[%s208 + $0x68] sm:%s201]
                  %237 = vst [vmem:[%s209 + $0x34] sm:%s201] %v236
                  %v238 = vld [vmem:[%s208 + $0x70] sm:%s201]
                  %239 = vst [vmem:[%s209 + $0x38] sm:%s201] %v238
                  %v240 = vld [vmem:[%s208 + $0x78] sm:%s201]
                  %241 = vst [vmem:[%s209 + $0x3c] sm:%s201] %v240
                $region55: #{run.3} parent=42 // loop_footer
                  %s207 = sadd.s32 1, %s203
                $region56: #{run.3} parent=42 // loop_footer_branch
                  %202 = sbr.rel target = $region52
                $region57: #{run.3} parent=42 // loop_exit
                  _
              $region43: #{run.3} parent=27 // pred_fallthru
                _
            $region28: #{run.3} parent=23 // pred_fallthru
              _
            // Predicated region
            $region29: #{run.3} parent=23 // pred_check
              _
            $region30: #{run.3} parent=23 // pred_check_branch
              %147 = sbr.rel (0) target = $region32
            $region31: #{run.3} parent=23 // pred_region
              %s149 = ssub.s32 16, 1
              loop: start=0, step=1, limit=1
              $region33: #{run.3} parent=31 // loop_pre_header
                _
              $region34: #{run.3} parent=31 // loop_header
                %s151 = sphi 0, %s155
                %p152 = scmp.ge.s32.totalorder %s151, 1
                %s156 = sphi %s141, %s141
                %s157 = sphi %s136, %s136
              $region35: #{run.3} parent=31 // loop_header_branch
                %154 = sbr.rel (%p152) target = $region39
              $region36: #{run.3} parent=31 // loop_body
                %v158 = vld [vmem:[%s156] sm:%s149]
                %159 = vst [vmem:[%s157] sm:%s149] %v158
                %v160 = vld [vmem:[%s156 + $0x8] sm:%s149]
                %161 = vst [vmem:[%s157 + $0x4] sm:%s149] %v160
                %v162 = vld [vmem:[%s156 + $0x10] sm:%s149]
                %163 = vst [vmem:[%s157 + $0x8] sm:%s149] %v162
                %v164 = vld [vmem:[%s156 + $0x18] sm:%s149]
                %165 = vst [vmem:[%s157 + $0xc] sm:%s149] %v164
                %v166 = vld [vmem:[%s156 + $0x20] sm:%s149]
                %167 = vst [vmem:[%s157 + $0x10] sm:%s149] %v166
                %v168 = vld [vmem:[%s156 + $0x28] sm:%s149]
                %169 = vst [vmem:[%s157 + $0x14] sm:%s149] %v168
                %v170 = vld [vmem:[%s156 + $0x30] sm:%s149]
                %171 = vst [vmem:[%s157 + $0x18] sm:%s149] %v170
                %v172 = vld [vmem:[%s156 + $0x38] sm:%s149]
                %173 = vst [vmem:[%s157 + $0x1c] sm:%s149] %v172
                %v174 = vld [vmem:[%s156 + $0x40] sm:%s149]
                %175 = vst [vmem:[%s157 + $0x20] sm:%s149] %v174
                %v176 = vld [vmem:[%s156 + $0x48] sm:%s149]
                %177 = vst [vmem:[%s157 + $0x24] sm:%s149] %v176
                %v178 = vld [vmem:[%s156 + $0x50] sm:%s149]
                %179 = vst [vmem:[%s157 + $0x28] sm:%s149] %v178
                %v180 = vld [vmem:[%s156 + $0x58] sm:%s149]
                %181 = vst [vmem:[%s157 + $0x2c] sm:%s149] %v180
                %v182 = vld [vmem:[%s156 + $0x60] sm:%s149]
                %183 = vst [vmem:[%s157 + $0x30] sm:%s149] %v182
                %v184 = vld [vmem:[%s156 + $0x68] sm:%s149]
                %185 = vst [vmem:[%s157 + $0x34] sm:%s149] %v184
                %v186 = vld [vmem:[%s156 + $0x70] sm:%s149]
                %187 = vst [vmem:[%s157 + $0x38] sm:%s149] %v186
                %v188 = vld [vmem:[%s156 + $0x78] sm:%s149]
                %189 = vst [vmem:[%s157 + $0x3c] sm:%s149] %v188
              $region37: #{run.3} parent=31 // loop_footer
                %s155 = sadd.s32 1, %s151
              $region38: #{run.3} parent=31 // loop_footer_branch
                %150 = sbr.rel target = $region34
              $region39: #{run.3} parent=31 // loop_exit
                _
            $region32: #{run.3} parent=23 // pred_fallthru
              _
          $region24: #{run.3} parent=19 // pred_fallthru
            _
          %242 = vnop
        $region20: #{run.3} parent=15 // pred_fallthru
          _
        // Predicated region
        $region58: #{run.3} parent=15 // pred_check
          %p243 = pneg %p77
        $region59: #{run.3} parent=15 // pred_check_branch
          %245 = sbr.rel (%p243) target = $region61
        $region60: #{run.3} parent=15 // pred_region
          %s246 = sand.u32 %s67, 1
          %s247 = sand.u32 %s67, 1
          %s248 = smul.addr %s247, 64
          %s249 = scalar_lea.vmem [#allocation4], %s248
          %s250 = smul.u32 16, %s17
          %s251 = smul.addr %s250, 2
          %s252 = sadd.s32 %s16, %s251
          %s253 = smul.addr %s252, 4
          %s254 = scalar_lea.vmem %s1, %s253
          // Predicated region
          $region62: #{run.3} parent=60 // pred_check
            _
          $region63: #{run.3} parent=60 // pred_check_branch
            %256 = sbr.rel (0) target = $region65
          $region64: #{run.3} parent=60 // pred_region
            // Predicated region
            $region66: #{run.3} parent=64 // pred_check
              _
            $region67: #{run.3} parent=64 // pred_check_branch
              %258 = sbr.rel target = $region69
            $region68: #{run.3} parent=64 // pred_region
              // Predicated region
              $region81: #{run.3} parent=68 // pred_check
                _
              $region82: #{run.3} parent=68 // pred_check_branch
                %304 = sbr.rel (0) target = $region84
              $region83: #{run.3} parent=68 // pred_region
                loop: start=0, step=1, limit=1
                $region85: #{run.3} parent=83 // loop_pre_header
                  _
                $region86: #{run.3} parent=83 // loop_header
                  %s306 = sphi 0, %s310
                  %p307 = scmp.ge.s32.totalorder %s306, 1
                  %s311 = sphi %s254, %s254
                  %s312 = sphi %s249, %s249
                $region87: #{run.3} parent=83 // loop_header_branch
                  %309 = sbr.rel (%p307) target = $region91
                $region88: #{run.3} parent=83 // loop_body
                  _
                $region89: #{run.3} parent=83 // loop_footer
                  %s310 = sadd.s32 1, %s306
                $region90: #{run.3} parent=83 // loop_footer_branch
                  %305 = sbr.rel target = $region86
                $region91: #{run.3} parent=83 // loop_exit
                  _
                %s314 = ssub.s32 16, 1
                loop: start=0, step=1, limit=1
                $region92: #{run.3} parent=83 // loop_pre_header
                  _
                $region93: #{run.3} parent=83 // loop_header
                  %s316 = sphi 0, %s320
                  %p317 = scmp.ge.s32.totalorder %s316, 1
                  %s321 = sphi %s254, %s254
                  %s322 = sphi %s249, %s249
                $region94: #{run.3} parent=83 // loop_header_branch
                  %319 = sbr.rel (%p317) target = $region98
                $region95: #{run.3} parent=83 // loop_body
                  %v323 = vld [vmem:[%s321] sm:%s314]
                  %324 = vst [vmem:[%s322] sm:%s314] %v323
                  %v325 = vld [vmem:[%s321 + $0x8] sm:%s314]
                  %326 = vst [vmem:[%s322 + $0x4] sm:%s314] %v325
                  %v327 = vld [vmem:[%s321 + $0x10] sm:%s314]
                  %328 = vst [vmem:[%s322 + $0x8] sm:%s314] %v327
                  %v329 = vld [vmem:[%s321 + $0x18] sm:%s314]
                  %330 = vst [vmem:[%s322 + $0xc] sm:%s314] %v329
                  %v331 = vld [vmem:[%s321 + $0x20] sm:%s314]
                  %332 = vst [vmem:[%s322 + $0x10] sm:%s314] %v331
                  %v333 = vld [vmem:[%s321 + $0x28] sm:%s314]
                  %334 = vst [vmem:[%s322 + $0x14] sm:%s314] %v333
                  %v335 = vld [vmem:[%s321 + $0x30] sm:%s314]
                  %336 = vst [vmem:[%s322 + $0x18] sm:%s314] %v335
                  %v337 = vld [vmem:[%s321 + $0x38] sm:%s314]
                  %338 = vst [vmem:[%s322 + $0x1c] sm:%s314] %v337
                  %v339 = vld [vmem:[%s321 + $0x40] sm:%s314]
                  %340 = vst [vmem:[%s322 + $0x20] sm:%s314] %v339
                  %v341 = vld [vmem:[%s321 + $0x48] sm:%s314]
                  %342 = vst [vmem:[%s322 + $0x24] sm:%s314] %v341
                  %v343 = vld [vmem:[%s321 + $0x50] sm:%s314]
                  %344 = vst [vmem:[%s322 + $0x28] sm:%s314] %v343
                  %v345 = vld [vmem:[%s321 + $0x58] sm:%s314]
                  %346 = vst [vmem:[%s322 + $0x2c] sm:%s314] %v345
                  %v347 = vld [vmem:[%s321 + $0x60] sm:%s314]
                  %348 = vst [vmem:[%s322 + $0x30] sm:%s314] %v347
                  %v349 = vld [vmem:[%s321 + $0x68] sm:%s314]
                  %350 = vst [vmem:[%s322 + $0x34] sm:%s314] %v349
                  %v351 = vld [vmem:[%s321 + $0x70] sm:%s314]
                  %352 = vst [vmem:[%s322 + $0x38] sm:%s314] %v351
                  %v353 = vld [vmem:[%s321 + $0x78] sm:%s314]
                  %354 = vst [vmem:[%s322 + $0x3c] sm:%s314] %v353
                $region96: #{run.3} parent=83 // loop_footer
                  %s320 = sadd.s32 1, %s316
                $region97: #{run.3} parent=83 // loop_footer_branch
                  %315 = sbr.rel target = $region93
                $region98: #{run.3} parent=83 // loop_exit
                  _
              $region84: #{run.3} parent=68 // pred_fallthru
                _
            $region69: #{run.3} parent=64 // pred_fallthru
              _
            // Predicated region
            $region70: #{run.3} parent=64 // pred_check
              _
            $region71: #{run.3} parent=64 // pred_check_branch
              %260 = sbr.rel (0) target = $region73
            $region72: #{run.3} parent=64 // pred_region
              %s262 = ssub.s32 16, 1
              loop: start=0, step=1, limit=1
              $region74: #{run.3} parent=72 // loop_pre_header
                _
              $region75: #{run.3} parent=72 // loop_header
                %s264 = sphi 0, %s268
                %p265 = scmp.ge.s32.totalorder %s264, 1
                %s269 = sphi %s254, %s254
                %s270 = sphi %s249, %s249
              $region76: #{run.3} parent=72 // loop_header_branch
                %267 = sbr.rel (%p265) target = $region80
              $region77: #{run.3} parent=72 // loop_body
                %v271 = vld [vmem:[%s269] sm:%s262]
                %272 = vst [vmem:[%s270] sm:%s262] %v271
                %v273 = vld [vmem:[%s269 + $0x8] sm:%s262]
                %274 = vst [vmem:[%s270 + $0x4] sm:%s262] %v273
                %v275 = vld [vmem:[%s269 + $0x10] sm:%s262]
                %276 = vst [vmem:[%s270 + $0x8] sm:%s262] %v275
                %v277 = vld [vmem:[%s269 + $0x18] sm:%s262]
                %278 = vst [vmem:[%s270 + $0xc] sm:%s262] %v277
                %v279 = vld [vmem:[%s269 + $0x20] sm:%s262]
                %280 = vst [vmem:[%s270 + $0x10] sm:%s262] %v279
                %v281 = vld [vmem:[%s269 + $0x28] sm:%s262]
                %282 = vst [vmem:[%s270 + $0x14] sm:%s262] %v281
                %v283 = vld [vmem:[%s269 + $0x30] sm:%s262]
                %284 = vst [vmem:[%s270 + $0x18] sm:%s262] %v283
                %v285 = vld [vmem:[%s269 + $0x38] sm:%s262]
                %286 = vst [vmem:[%s270 + $0x1c] sm:%s262] %v285
                %v287 = vld [vmem:[%s269 + $0x40] sm:%s262]
                %288 = vst [vmem:[%s270 + $0x20] sm:%s262] %v287
                %v289 = vld [vmem:[%s269 + $0x48] sm:%s262]
                %290 = vst [vmem:[%s270 + $0x24] sm:%s262] %v289
                %v291 = vld [vmem:[%s269 + $0x50] sm:%s262]
                %292 = vst [vmem:[%s270 + $0x28] sm:%s262] %v291
                %v293 = vld [vmem:[%s269 + $0x58] sm:%s262]
                %294 = vst [vmem:[%s270 + $0x2c] sm:%s262] %v293
                %v295 = vld [vmem:[%s269 + $0x60] sm:%s262]
                %296 = vst [vmem:[%s270 + $0x30] sm:%s262] %v295
                %v297 = vld [vmem:[%s269 + $0x68] sm:%s262]
                %298 = vst [vmem:[%s270 + $0x34] sm:%s262] %v297
                %v299 = vld [vmem:[%s269 + $0x70] sm:%s262]
                %300 = vst [vmem:[%s270 + $0x38] sm:%s262] %v299
                %v301 = vld [vmem:[%s269 + $0x78] sm:%s262]
                %302 = vst [vmem:[%s270 + $0x3c] sm:%s262] %v301
              $region78: #{run.3} parent=72 // loop_footer
                %s268 = sadd.s32 1, %s264
              $region79: #{run.3} parent=72 // loop_footer_branch
                %263 = sbr.rel target = $region75
              $region80: #{run.3} parent=72 // loop_exit
                _
            $region73: #{run.3} parent=64 // pred_fallthru
              _
          $region65: #{run.3} parent=60 // pred_fallthru
            _
          %355 = vnop
        $region61: #{run.3} parent=15 // pred_fallthru
          _
      $region16: #{run.3} parent=5 // pred_fallthru
        _
      %p356 = scmp.le.s32.totalorder 1, %s8
      %p357 = scmp.lt.s32.totalorder %s8, 9
      %p358 = pnand %p356, %p357
      %p359 = pneg %p358
      // Predicated region
      $region99: #{run.3} parent=5 // pred_check
        _
      $region100: #{run.3} parent=5 // pred_check_branch
        %361 = sbr.rel (%p358) target = $region102
      $region101: #{run.3} parent=5 // pred_region
        %s362 = ssub.s32 %s8, 1
        %s363 = sand.u32 %s42, 1
        %s364 = sand.u32 %s42, 1
        %s365 = smul.addr %s364, 64
        %s366 = scalar_lea.vmem [#allocation3], %s365
        // Predicated region
        $region103: #{run.3} parent=101 // pred_check
          %p367 = pneg %p55
        $region104: #{run.3} parent=101 // pred_check_branch
          %369 = sbr.rel (%p367) target = $region106
        $region105: #{run.3} parent=101 // pred_region
          _
        $region106: #{run.3} parent=101 // pred_fallthru
          _
        %s370 = sand.u32 %s70, 1
        %s371 = sand.u32 %s70, 1
        %s372 = smul.addr %s371, 64
        %s373 = scalar_lea.vmem [#allocation4], %s372
        // Predicated region
        $region107: #{run.3} parent=101 // pred_check
          %p374 = pneg %p83
        $region108: #{run.3} parent=101 // pred_check_branch
          %376 = sbr.rel (%p374) target = $region110
        $region109: #{run.3} parent=101 // pred_region
          _
        $region110: #{run.3} parent=101 // pred_fallthru
          _
        %s377 = sand.u32 %s42, 1
        %s378 = sand.u32 %s42, 1
        %s379 = smul.addr %s378, 64
        %s380 = scalar_lea.vmem [#allocation3], %s379
        %p381 = pneg %p55
        %p382 = pneg %p52
        %s383 = sand.u32 %s70, 1
        %s384 = sand.u32 %s70, 1
        %s385 = smul.addr %s384, 64
        %s386 = scalar_lea.vmem [#allocation4], %s385
        %p387 = pneg %p83
        %p388 = pneg %p80
        %p389 = pneg %p111
        %p390 = pneg %p108
        %s391 = sand.u32 %s98, 1
        %s392 = sand.u32 %s98, 1
        %s393 = smul.addr %s392, 128
        %s394 = scalar_lea.vmem [#allocation5], %s393
        %s395 = smul.u32 16, %s18
        %s396 = smul.u32 16, %s20
        %s397 = smul.u32 16, %s18
        %p398 = scmp.eq.s32.totalorder %s20, 0
        // Predicated region
        $region111: #{run.3} parent=101 // pred_check
          %p399 = pneg %p398
        $region112: #{run.3} parent=101 // pred_check_branch
          %401 = sbr.rel (%p399) target = $region114
        $region113: #{run.3} parent=101 // pred_region
          %402 = vst [vmem:[#allocation2] sm:$0xff] 0.0
          %403 = vst [vmem:[#allocation2 + $0x8] sm:$0xff] 0.0
          %404 = vst [vmem:[#allocation2 + $0x10] sm:$0xff] 0.0
          %405 = vst [vmem:[#allocation2 + $0x18] sm:$0xff] 0.0
          %406 = vst [vmem:[#allocation2 + $0x20] sm:$0xff] 0.0
          %407 = vst [vmem:[#allocation2 + $0x28] sm:$0xff] 0.0
          %408 = vst [vmem:[#allocation2 + $0x30] sm:$0xff] 0.0
          %409 = vst [vmem:[#allocation2 + $0x38] sm:$0xff] 0.0
          %410 = vst [vmem:[#allocation2 + $0x40] sm:$0xff] 0.0
          %411 = vst [vmem:[#allocation2 + $0x48] sm:$0xff] 0.0
          %412 = vst [vmem:[#allocation2 + $0x50] sm:$0xff] 0.0
          %413 = vst [vmem:[#allocation2 + $0x58] sm:$0xff] 0.0
          %414 = vst [vmem:[#allocation2 + $0x60] sm:$0xff] 0.0
          %415 = vst [vmem:[#allocation2 + $0x68] sm:$0xff] 0.0
          %416 = vst [vmem:[#allocation2 + $0x70] sm:$0xff] 0.0
          %417 = vst [vmem:[#allocation2 + $0x78] sm:$0xff] 0.0
        $region114: #{run.3} parent=101 // pred_fallthru
          _
        %v418 = vld [vmem:[#allocation2] sm:$0xff]
        %v419 = vld [vmem:[#allocation2 + $0x8] sm:$0xff]
        %v420 = vld [vmem:[#allocation2 + $0x10] sm:$0xff]
        %v421 = vld [vmem:[#allocation2 + $0x18] sm:$0xff]
        %v422 = vld [vmem:[#allocation2 + $0x20] sm:$0xff]
        %v423 = vld [vmem:[#allocation2 + $0x28] sm:$0xff]
        %v424 = vld [vmem:[#allocation2 + $0x30] sm:$0xff]
        %v425 = vld [vmem:[#allocation2 + $0x38] sm:$0xff]
        %v426 = vld [vmem:[#allocation2 + $0x40] sm:$0xff]
        %v427 = vld [vmem:[#allocation2 + $0x48] sm:$0xff]
        %v428 = vld [vmem:[#allocation2 + $0x50] sm:$0xff]
        %v429 = vld [vmem:[#allocation2 + $0x58] sm:$0xff]
        %v430 = vld [vmem:[#allocation2 + $0x60] sm:$0xff]
        %v431 = vld [vmem:[#allocation2 + $0x68] sm:$0xff]
        %v432 = vld [vmem:[#allocation2 + $0x70] sm:$0xff]
        %v433 = vld [vmem:[#allocation2 + $0x78] sm:$0xff]
        %v434 = vld [vmem:[%s366] sm:$0xf]
        %v435 = vld [vmem:[%s366 + $0x4] sm:$0xf]
        %v436 = vld [vmem:[%s366 + $0x8] sm:$0xf]
        %v437 = vld [vmem:[%s366 + $0xc] sm:$0xf]
        %v438 = vld [vmem:[%s366 + $0x10] sm:$0xf]
        %v439 = vld [vmem:[%s366 + $0x14] sm:$0xf]
        %v440 = vld [vmem:[%s366 + $0x18] sm:$0xf]
        %v441 = vld [vmem:[%s366 + $0x1c] sm:$0xf]
        %v442 = vld [vmem:[%s366 + $0x20] sm:$0xf]
        %v443 = vld [vmem:[%s366 + $0x24] sm:$0xf]
        %v444 = vld [vmem:[%s366 + $0x28] sm:$0xf]
        %v445 = vld [vmem:[%s366 + $0x2c] sm:$0xf]
        %v446 = vld [vmem:[%s366 + $0x30] sm:$0xf]
        %v447 = vld [vmem:[%s366 + $0x34] sm:$0xf]
        %v448 = vld [vmem:[%s366 + $0x38] sm:$0xf]
        %v449 = vld [vmem:[%s366 + $0x3c] sm:$0xf]
        %v450 = vld [vmem:[%s373] sm:$0xf]
        %v451 = vld [vmem:[%s373 + $0x4] sm:$0xf]
        %v452 = vld [vmem:[%s373 + $0x8] sm:$0xf]
        %v453 = vld [vmem:[%s373 + $0xc] sm:$0xf]
        %v454 = vld [vmem:[%s373 + $0x10] sm:$0xf]
        %v455 = vld [vmem:[%s373 + $0x14] sm:$0xf]
        %v456 = vld [vmem:[%s373 + $0x18] sm:$0xf]
        %v457 = vld [vmem:[%s373 + $0x1c] sm:$0xf]
        %v458 = vld [vmem:[%s373 + $0x20] sm:$0xf]
        %v459 = vld [vmem:[%s373 + $0x24] sm:$0xf]
        %v460 = vld [vmem:[%s373 + $0x28] sm:$0xf]
        %v461 = vld [vmem:[%s373 + $0x2c] sm:$0xf]
        %v462 = vld [vmem:[%s373 + $0x30] sm:$0xf]
        %v463 = vld [vmem:[%s373 + $0x34] sm:$0xf]
        %v464 = vld [vmem:[%s373 + $0x38] sm:$0xf]
        %v465 = vld [vmem:[%s373 + $0x3c] sm:$0xf]
        %v482 = vunpack.c.l.b16 %v434
        %v483 = vunpack.c.l.b16 %v435
        %v484 = vunpack.c.l.b16 %v436
        %v485 = vunpack.c.l.b16 %v437
        %v486 = vunpack.c.l.b16 %v438
        %v487 = vunpack.c.l.b16 %v439
        %v488 = vunpack.c.l.b16 %v440
        %v489 = vunpack.c.l.b16 %v441
        %v490 = vunpack.c.l.b16 %v442
        %v491 = vunpack.c.l.b16 %v443
        %v492 = vunpack.c.l.b16 %v444
        %v493 = vunpack.c.l.b16 %v445
        %v494 = vunpack.c.l.b16 %v446
        %v495 = vunpack.c.l.b16 %v447
        %v496 = vunpack.c.l.b16 %v448
        %v497 = vunpack.c.l.b16 %v449
        %v498 = vpack.c.b16 %v483, %v482
        %v499 = vpack.c.b16 %v485, %v484
        %v500 = vpack.c.b16 %v487, %v486
        %v501 = vpack.c.b16 %v489, %v488
        %v502 = vpack.c.b16 %v491, %v490
        %v503 = vpack.c.b16 %v493, %v492
        %v504 = vpack.c.b16 %v495, %v494
        %v505 = vpack.c.b16 %v497, %v496
        %v530 = vunpack.c.l.b16 %v450
        %v531 = vunpack.c.l.b16 %v451
        %v532 = vunpack.c.l.b16 %v452
        %v533 = vunpack.c.l.b16 %v453
        %v534 = vunpack.c.l.b16 %v454
        %v535 = vunpack.c.l.b16 %v455
        %v536 = vunpack.c.l.b16 %v456
        %v537 = vunpack.c.l.b16 %v457
        %v538 = vunpack.c.l.b16 %v458
        %v539 = vunpack.c.l.b16 %v459
        %v540 = vunpack.c.l.b16 %v460
        %v541 = vunpack.c.l.b16 %v461
        %v542 = vunpack.c.l.b16 %v462
        %v543 = vunpack.c.l.b16 %v463
        %v544 = vunpack.c.l.b16 %v464
        %v545 = vunpack.c.l.b16 %v465
        %v546 = vpack.c.b16 %v531, %v530
        %v547 = vpack.c.b16 %v533, %v532
        %v548 = vpack.c.b16 %v535, %v534
        %v549 = vpack.c.b16 %v537, %v536
        %v550 = vpack.c.b16 %v539, %v538
        %v551 = vpack.c.b16 %v541, %v540
        %v552 = vpack.c.b16 %v543, %v542
        %v553 = vpack.c.b16 %v545, %v544
        %562 = vmatpush.bf16.msra.mxu0 %v553
        %563 = vmatpush.bf16.msra.mxu0 %v552
        %564 = vmatpush.bf16.msra.mxu0 %v551
        %565 = vmatpush.bf16.msra.mxu0 %v550
        %566 = vmatpush.bf16.msra.mxu0 %v549
        %567 = vmatpush.bf16.msra.mxu0 %v548
        %568 = vmatpush.bf16.msra.mxu0 %v547
        %569 = vmatpush.bf16.msra.mxu0 %v546
        %570 = vmatmul.bf16.gmra.mxu0 %v498
        %v571 = vpop.f32.mrf.mxu0
        %v572 = vadd.f32 0.0, %v571
        %v573 = vpop.f32.mrf.mxu0
        %v574 = vadd.f32 0.0, %v573
        %575 = vmatmul.bf16.gmra.mxu0 %v499
        %v576 = vpop.f32.mrf.mxu0
        %v577 = vadd.f32 0.0, %v576
        %v578 = vpop.f32.mrf.mxu0
        %v579 = vadd.f32 0.0, %v578
        %580 = vmatmul.bf16.gmra.mxu0 %v500
        %v581 = vpop.f32.mrf.mxu0
        %v582 = vadd.f32 0.0, %v581
        %v583 = vpop.f32.mrf.mxu0
        %v584 = vadd.f32 0.0, %v583
        %585 = vmatmul.bf16.gmra.mxu0 %v501
        %v586 = vpop.f32.mrf.mxu0
        %v587 = vadd.f32 0.0, %v586
        %v588 = vpop.f32.mrf.mxu0
        %v589 = vadd.f32 0.0, %v588
        %590 = vmatmul.bf16.gmra.mxu0 %v502
        %v591 = vpop.f32.mrf.mxu0
        %v592 = vadd.f32 0.0, %v591
        %v593 = vpop.f32.mrf.mxu0
        %v594 = vadd.f32 0.0, %v593
        %595 = vmatmul.bf16.gmra.mxu0 %v503
        %v596 = vpop.f32.mrf.mxu0
        %v597 = vadd.f32 0.0, %v596
        %v598 = vpop.f32.mrf.mxu0
        %v599 = vadd.f32 0.0, %v598
        %600 = vmatmul.bf16.gmra.mxu0 %v504
        %v601 = vpop.f32.mrf.mxu0
        %v602 = vadd.f32 0.0, %v601
        %v603 = vpop.f32.mrf.mxu0
        %v604 = vadd.f32 0.0, %v603
        %605 = vmatmul.bf16.gmra.mxu0 %v505
        %v606 = vpop.f32.mrf.mxu0
        %v607 = vadd.f32 0.0, %v606
        %v608 = vpop.f32.mrf.mxu0
        %v609 = vadd.f32 0.0, %v608
        %610 = vdwg.mxu0
        %v611 = vadd.f32 %v418, %v572
        %v612 = vadd.f32 %v419, %v574
        %v613 = vadd.f32 %v420, %v577
        %v614 = vadd.f32 %v421, %v579
        %v615 = vadd.f32 %v422, %v582
        %v616 = vadd.f32 %v423, %v584
        %v617 = vadd.f32 %v424, %v587
        %v618 = vadd.f32 %v425, %v589
        %v619 = vadd.f32 %v426, %v592
        %v620 = vadd.f32 %v427, %v594
        %v621 = vadd.f32 %v428, %v597
        %v622 = vadd.f32 %v429, %v599
        %v623 = vadd.f32 %v430, %v602
        %v624 = vadd.f32 %v431, %v604
        %v625 = vadd.f32 %v432, %v607
        %v626 = vadd.f32 %v433, %v609
        %627 = vst [vmem:[#allocation2] sm:$0xff] %v611
        %628 = vst [vmem:[#allocation2 + $0x8] sm:$0xff] %v612
        %629 = vst [vmem:[#allocation2 + $0x10] sm:$0xff] %v613
        %630 = vst [vmem:[#allocation2 + $0x18] sm:$0xff] %v614
        %631 = vst [vmem:[#allocation2 + $0x20] sm:$0xff] %v615
        %632 = vst [vmem:[#allocation2 + $0x28] sm:$0xff] %v616
        %633 = vst [vmem:[#allocation2 + $0x30] sm:$0xff] %v617
        %634 = vst [vmem:[#allocation2 + $0x38] sm:$0xff] %v618
        %635 = vst [vmem:[#allocation2 + $0x40] sm:$0xff] %v619
        %636 = vst [vmem:[#allocation2 + $0x48] sm:$0xff] %v620
        %637 = vst [vmem:[#allocation2 + $0x50] sm:$0xff] %v621
        %638 = vst [vmem:[#allocation2 + $0x58] sm:$0xff] %v622
        %639 = vst [vmem:[#allocation2 + $0x60] sm:$0xff] %v623
        %640 = vst [vmem:[#allocation2 + $0x68] sm:$0xff] %v624
        %641 = vst [vmem:[#allocation2 + $0x70] sm:$0xff] %v625
        %642 = vst [vmem:[#allocation2 + $0x78] sm:$0xff] %v626
        %p643 = scmp.eq.s32.totalorder %s20, 1
        // Predicated region
        $region115: #{run.3} parent=101 // pred_check
          %p644 = pneg %p643
        $region116: #{run.3} parent=101 // pred_check_branch
          %646 = sbr.rel (%p644) target = $region118
        $region117: #{run.3} parent=101 // pred_region
          %v647 = vld [vmem:[#allocation2] sm:$0xff]
          %v648 = vld [vmem:[#allocation2 + $0x8] sm:$0xff]
          %v649 = vld [vmem:[#allocation2 + $0x10] sm:$0xff]
          %v650 = vld [vmem:[#allocation2 + $0x18] sm:$0xff]
          %v651 = vld [vmem:[#allocation2 + $0x20] sm:$0xff]
          %v652 = vld [vmem:[#allocation2 + $0x28] sm:$0xff]
          %v653 = vld [vmem:[#allocation2 + $0x30] sm:$0xff]
          %v654 = vld [vmem:[#allocation2 + $0x38] sm:$0xff]
          %v655 = vld [vmem:[#allocation2 + $0x40] sm:$0xff]
          %v656 = vld [vmem:[#allocation2 + $0x48] sm:$0xff]
          %v657 = vld [vmem:[#allocation2 + $0x50] sm:$0xff]
          %v658 = vld [vmem:[#allocation2 + $0x58] sm:$0xff]
          %v659 = vld [vmem:[#allocation2 + $0x60] sm:$0xff]
          %v660 = vld [vmem:[#allocation2 + $0x68] sm:$0xff]
          %v661 = vld [vmem:[#allocation2 + $0x70] sm:$0xff]
          %v662 = vld [vmem:[#allocation2 + $0x78] sm:$0xff]
          %663 = vst [vmem:[%s394] sm:$0xff] %v647
          %664 = vst [vmem:[%s394 + $0x8] sm:$0xff] %v648
          %665 = vst [vmem:[%s394 + $0x10] sm:$0xff] %v649
          %666 = vst [vmem:[%s394 + $0x18] sm:$0xff] %v650
          %667 = vst [vmem:[%s394 + $0x20] sm:$0xff] %v651
          %668 = vst [vmem:[%s394 + $0x28] sm:$0xff] %v652
          %669 = vst [vmem:[%s394 + $0x30] sm:$0xff] %v653
          %670 = vst [vmem:[%s394 + $0x38] sm:$0xff] %v654
          %671 = vst [vmem:[%s394 + $0x40] sm:$0xff] %v655
          %672 = vst [vmem:[%s394 + $0x48] sm:$0xff] %v656
          %673 = vst [vmem:[%s394 + $0x50] sm:$0xff] %v657
          %674 = vst [vmem:[%s394 + $0x58] sm:$0xff] %v658
          %675 = vst [vmem:[%s394 + $0x60] sm:$0xff] %v659
          %676 = vst [vmem:[%s394 + $0x68] sm:$0xff] %v660
          %677 = vst [vmem:[%s394 + $0x70] sm:$0xff] %v661
          %678 = vst [vmem:[%s394 + $0x78] sm:$0xff] %v662
        $region118: #{run.3} parent=101 // pred_fallthru
          _
        %s679 = sand.u32 %s98, 1
        %s680 = sand.u32 %s98, 1
        %s681 = smul.addr %s680, 128
        %s682 = scalar_lea.vmem [#allocation5], %s681
        // Predicated region
        $region119: #{run.3} parent=101 // pred_check
          %p683 = pneg %p108
        $region120: #{run.3} parent=101 // pred_check_branch
          %685 = sbr.rel (%p683) target = $region122
        $region121: #{run.3} parent=101 // pred_region
          %s686 = smul.u32 16, %s18
          %s687 = smul.addr %s686, 2
          %s688 = sadd.s32 %s19, %s687
          %s689 = smul.addr %s688, 8
          %s690 = scalar_lea.vmem %s2, %s689
          // Predicated region
          $region123: #{run.3} parent=121 // pred_check
            _
          $region124: #{run.3} parent=121 // pred_check_branch
            %692 = sbr.rel (0) target = $region126
          $region125: #{run.3} parent=121 // pred_region
            // Predicated region
            $region127: #{run.3} parent=125 // pred_check
              _
            $region128: #{run.3} parent=125 // pred_check_branch
              %694 = sbr.rel (0) target = $region130
            $region129: #{run.3} parent=125 // pred_region
              // Predicated region
              $region142: #{run.3} parent=129 // pred_check
                _
              $region143: #{run.3} parent=129 // pred_check_branch
                %740 = sbr.rel (0) target = $region145
              $region144: #{run.3} parent=129 // pred_region
                loop: start=0, step=1, limit=1
                $region146: #{run.3} parent=144 // loop_pre_header
                  _
                $region147: #{run.3} parent=144 // loop_header
                  %s742 = sphi 0, %s746
                  %p743 = scmp.ge.s32.totalorder %s742, 1
                  %s747 = sphi %s682, %s682
                  %s748 = sphi %s690, %s690
                $region148: #{run.3} parent=144 // loop_header_branch
                  %745 = sbr.rel (%p743) target = $region152
                $region149: #{run.3} parent=144 // loop_body
                  %v749 = vld [vmem:[%s747] sm:$0xff]
                  %750 = vst [vmem:[%s748] sm:$0xff] %v749
                  %v751 = vld [vmem:[%s747 + $0x8] sm:$0xff]
                  %752 = vst [vmem:[%s748 + $0x10] sm:$0xff] %v751
                  %v753 = vld [vmem:[%s747 + $0x10] sm:$0xff]
                  %754 = vst [vmem:[%s748 + $0x20] sm:$0xff] %v753
                  %v755 = vld [vmem:[%s747 + $0x18] sm:$0xff]
                  %756 = vst [vmem:[%s748 + $0x30] sm:$0xff] %v755
                  %v757 = vld [vmem:[%s747 + $0x20] sm:$0xff]
                  %758 = vst [vmem:[%s748 + $0x40] sm:$0xff] %v757
                  %v759 = vld [vmem:[%s747 + $0x28] sm:$0xff]
                  %760 = vst [vmem:[%s748 + $0x50] sm:$0xff] %v759
                  %v761 = vld [vmem:[%s747 + $0x30] sm:$0xff]
                  %762 = vst [vmem:[%s748 + $0x60] sm:$0xff] %v761
                  %v763 = vld [vmem:[%s747 + $0x38] sm:$0xff]
                  %764 = vst [vmem:[%s748 + $0x70] sm:$0xff] %v763
                  %v765 = vld [vmem:[%s747 + $0x40] sm:$0xff]
                  %766 = vst [vmem:[%s748 + $0x80] sm:$0xff] %v765
                  %v767 = vld [vmem:[%s747 + $0x48] sm:$0xff]
                  %768 = vst [vmem:[%s748 + $0x90] sm:$0xff] %v767
                  %v769 = vld [vmem:[%s747 + $0x50] sm:$0xff]
                  %770 = vst [vmem:[%s748 + $0xa0] sm:$0xff] %v769
                  %v771 = vld [vmem:[%s747 + $0x58] sm:$0xff]
                  %772 = vst [vmem:[%s748 + $0xb0] sm:$0xff] %v771
                  %v773 = vld [vmem:[%s747 + $0x60] sm:$0xff]
                  %774 = vst [vmem:[%s748 + $0xc0] sm:$0xff] %v773
                  %v775 = vld [vmem:[%s747 + $0x68] sm:$0xff]
                  %776 = vst [vmem:[%s748 + $0xd0] sm:$0xff] %v775
                  %v777 = vld [vmem:[%s747 + $0x70] sm:$0xff]
                  %778 = vst [vmem:[%s748 + $0xe0] sm:$0xff] %v777
                  %v779 = vld [vmem:[%s747 + $0x78] sm:$0xff]
                  %780 = vst [vmem:[%s748 + $0xf0] sm:$0xff] %v779
                $region150: #{run.3} parent=144 // loop_footer
                  %s746 = sadd.s32 1, %s742
                $region151: #{run.3} parent=144 // loop_footer_branch
                  %741 = sbr.rel target = $region147
                $region152: #{run.3} parent=144 // loop_exit
                  _
              $region145: #{run.3} parent=129 // pred_fallthru
                _
              // Predicated region
              $region153: #{run.3} parent=129 // pred_check
                _
              $region154: #{run.3} parent=129 // pred_check_branch
                %782 = sbr.rel target = $region156
              $region155: #{run.3} parent=129 // pred_region
                _
              $region156: #{run.3} parent=129 // pred_fallthru
                _
            $region130: #{run.3} parent=125 // pred_fallthru
              _
            // Predicated region
            $region131: #{run.3} parent=125 // pred_check
              _
            $region132: #{run.3} parent=125 // pred_check_branch
              %696 = sbr.rel target = $region134
            $region133: #{run.3} parent=125 // pred_region
              %s698 = ssub.s32 256, 1
              loop: start=0, step=1, limit=1
              $region135: #{run.3} parent=133 // loop_pre_header
                _
              $region136: #{run.3} parent=133 // loop_header
                %s700 = sphi 0, %s704
                %p701 = scmp.ge.s32.totalorder %s700, 1
                %s705 = sphi %s682, %s682
                %s706 = sphi %s690, %s690
              $region137: #{run.3} parent=133 // loop_header_branch
                %703 = sbr.rel (%p701) target = $region141
              $region138: #{run.3} parent=133 // loop_body
                %v707 = vld [vmem:[%s705] sm:%s698]
                %708 = vst [vmem:[%s706] sm:%s698] %v707
                %v709 = vld [vmem:[%s705 + $0x8] sm:%s698]
                %710 = vst [vmem:[%s706 + $0x10] sm:%s698] %v709
                %v711 = vld [vmem:[%s705 + $0x10] sm:%s698]
                %712 = vst [vmem:[%s706 + $0x20] sm:%s698] %v711
                %v713 = vld [vmem:[%s705 + $0x18] sm:%s698]
                %714 = vst [vmem:[%s706 + $0x30] sm:%s698] %v713
                %v715 = vld [vmem:[%s705 + $0x20] sm:%s698]
                %716 = vst [vmem:[%s706 + $0x40] sm:%s698] %v715
                %v717 = vld [vmem:[%s705 + $0x28] sm:%s698]
                %718 = vst [vmem:[%s706 + $0x50] sm:%s698] %v717
                %v719 = vld [vmem:[%s705 + $0x30] sm:%s698]
                %720 = vst [vmem:[%s706 + $0x60] sm:%s698] %v719
                %v721 = vld [vmem:[%s705 + $0x38] sm:%s698]
                %722 = vst [vmem:[%s706 + $0x70] sm:%s698] %v721
                %v723 = vld [vmem:[%s705 + $0x40] sm:%s698]
                %724 = vst [vmem:[%s706 + $0x80] sm:%s698] %v723
                %v725 = vld [vmem:[%s705 + $0x48] sm:%s698]
                %726 = vst [vmem:[%s706 + $0x90] sm:%s698] %v725
                %v727 = vld [vmem:[%s705 + $0x50] sm:%s698]
                %728 = vst [vmem:[%s706 + $0xa0] sm:%s698] %v727
                %v729 = vld [vmem:[%s705 + $0x58] sm:%s698]
                %730 = vst [vmem:[%s706 + $0xb0] sm:%s698] %v729
                %v731 = vld [vmem:[%s705 + $0x60] sm:%s698]
                %732 = vst [vmem:[%s706 + $0xc0] sm:%s698] %v731
                %v733 = vld [vmem:[%s705 + $0x68] sm:%s698]
                %734 = vst [vmem:[%s706 + $0xd0] sm:%s698] %v733
                %v735 = vld [vmem:[%s705 + $0x70] sm:%s698]
                %736 = vst [vmem:[%s706 + $0xe0] sm:%s698] %v735
                %v737 = vld [vmem:[%s705 + $0x78] sm:%s698]
                %738 = vst [vmem:[%s706 + $0xf0] sm:%s698] %v737
              $region139: #{run.3} parent=133 // loop_footer
                %s704 = sadd.s32 1, %s700
              $region140: #{run.3} parent=133 // loop_footer_branch
                %699 = sbr.rel target = $region136
              $region141: #{run.3} parent=133 // loop_exit
                _
            $region134: #{run.3} parent=125 // pred_fallthru
              _
          $region126: #{run.3} parent=121 // pred_fallthru
            _
          %783 = vnop
        $region122: #{run.3} parent=101 // pred_fallthru
          _
      $region102: #{run.3} parent=5 // pred_fallthru
        _
      %p784 = scmp.le.s32.totalorder 2, %s8
      // Predicated region
      $region157: #{run.3} parent=5 // pred_check
        %p785 = pneg %p784
      $region158: #{run.3} parent=5 // pred_check_branch
        %787 = sbr.rel (%p785) target = $region160
      $region159: #{run.3} parent=5 // pred_region
        %s788 = ssub.s32 %s8, 2
        // Predicated region
        $region161: #{run.3} parent=159 // pred_check
          %p789 = pneg %p114
        $region162: #{run.3} parent=159 // pred_check_branch
          %791 = sbr.rel (%p789) target = $region164
        $region163: #{run.3} parent=159 // pred_region
          %s792 = sand.u32 %s99, 1
          %s793 = sand.u32 %s99, 1
          %s794 = smul.addr %s793, 128
          %s795 = scalar_lea.vmem [#allocation5], %s794
        $region164: #{run.3} parent=159 // pred_fallthru
          _
      $region160: #{run.3} parent=5 // pred_fallthru
        _
    $region6: #{run.3} parent=1 // loop_footer
      %s12 = sadd.s32 1, %s8
    $region7: #{run.3} parent=1 // loop_footer_branch
      %7 = sbr.rel target = $region3
    $region8: #{run.3} parent=1 // loop_exit
      _

// kernel: run.2
$region0: #{run.2}
  #allocation0 [shape = 'u32[]', space=smem, size = 0x4, offset = 0x4, fixed_abs, tag = 'smem constant byte address 0x4 - core index']
  #allocation1 [shape = 'u32[72,128]{1,0:T(1,128)}', space=vmem, size = 0x9000, scoped, tag = 'internal scratch']
  #allocation2 [shape = 'f32[128,128]{1,0:T(8,128)}', space=vmem, size = 0x10000, scoped, tag = 'scratch operand']
  #allocation3 [shape = 'f32[128,128]{1,0:T(8,128)}', space=vmem, size = 0x10000, scoped, tag = 'scratch operand']
  %s0 = inlined_call_operand.vmem [shape: bf16[256,256], index: 0, kind: input, shape index: {}]
  %s1 = inlined_call_operand.vmem [shape: bf16[256,256], index: 1, kind: input, shape index: {}]
  %s2 = inlined_call_operand.vmem [shape: bf16[256,256], index: 2, kind: input, shape index: {}]
  %s3 = inlined_call_operand.vmem [shape: f32[1,256], index: 3, kind: input, shape index: {}]
  %s4 = inlined_call_operand.vmem [shape: bf16[256,256], index: 4, kind: output, shape index: {}]
  %s5 = sld [smem:[#allocation0]]
  $region217: #{run.2} parent=0
    _
  %s7 = ssub.s32 1, %s5
  %s8 = scalar_select 0, %s7, %s5
  $region1: #{run.2} parent=0
    #allocation4 [shape = 'u8[65536]{0}', space=vmem, size = 0x10000, scoped, tag = 'input window, operand 0']
    #allocation5 [shape = 'u8[65536]{0}', space=vmem, size = 0x10000, scoped, tag = 'input window, operand 1']
    #allocation6 [shape = 'u8[65536]{0}', space=vmem, size = 0x10000, scoped, tag = 'input window, operand 2']
    #allocation7 [shape = 'u8[65536]{0}', space=vmem, size = 0x10000, scoped, tag = 'output window, operand 0']
    loop: start=0, step=1, limit=10
    $region2: #{run.2} parent=1 // loop_pre_header
      _
    $region3: #{run.2} parent=1 // loop_header
      %s10 = sphi 0, %s14
      %p11 = scmp.ge.s32.totalorder %s10, 10
      %s17 = sphi 0, %s36
      %s18 = sphi 0, %s32
      %s19 = sphi 0, %s28
      %s20 = sphi 0, %s17
      %s21 = sphi 0, %s18
      %s22 = sphi 0, %s19
      %s23 = sphi 0, %s20
      %s24 = sphi 0, %s21
      %s25 = sphi 0, %s22
      %s41 = sphi 0, %s43
      %s44 = sphi 0, %s41
      %s45 = sphi 0, %s44
      %s61 = sphi 0, %s45
      %s69 = sphi 0, %s71
      %s72 = sphi 0, %s69
      %s73 = sphi 0, %s72
      %s89 = sphi 0, %s73
      %s97 = sphi 0, %s99
      %s100 = sphi 0, %s97
      %s101 = sphi 0, %s100
      %s117 = sphi 0, %s101
      %s123 = sphi 0, %s125
      %s126 = sphi 0, %s123
      %s127 = sphi 0, %s126
      %s143 = sphi 0, %s127
      %s151 = sphi 0, %s153
      %s154 = sphi 0, %s151
      %s155 = sphi 0, %s154
      %s171 = sphi 0, %s155
    $region4: #{run.2} parent=1 // loop_header_branch
      %13 = sbr.rel (%p11) target = $region8
    $region5: #{run.2} parent=1 // loop_body
      %s15 = ssub.s32 %s10, 1
      %s16 = ssub.s32 %s10, 2
      %s26 = sadd.s32 1, %s19
      %p27 = scmp.ge.s32.totalorder %s26, 2
      %s28 = scalar_select %p27, 0, %s26
      %s29 = sadd.s32 1, %s18
      %s30 = scalar_select %p27, %s29, %s18
      %p31 = scmp.ge.s32.totalorder %s30, 2
      %s32 = scalar_select %p31, 0, %s30
      %s33 = sadd.s32 1, %s17
      %s34 = scalar_select %p31, %s33, %s17
      %p35 = scmp.ge.s32.totalorder %s34, 2
      %s36 = scalar_select %p35, 0, %s34
      %s37 = ssub.s32 %s17, %s36
      %s38 = ssub.s32 %s19, %s28
      %s39 = sor.u32 %s37, %s38
      %p40 = scmp.eq.s32.totalorder %s39, 0
      %s42 = sadd.s32 %s41, 1
      %s43 = scalar_select %p40, %s41, %s42
      %p46 = pneg %p40
      %p47 = scmp.eq.s32.totalorder %s10, 7
      %p48 = por %p46, %p47
      %p49 = scmp.ne.s32.totalorder %s41, %s44
      %p50 = scmp.eq.s32.totalorder %s10, 0
      %p51 = por %p49, %p50
      %p52 = scmp.ne.s32.totalorder %s41, %s44
      %p53 = scmp.eq.s32.totalorder %s15, 7
      %p54 = por %p52, %p53
      %p55 = scmp.ne.s32.totalorder %s44, %s45
      %p56 = scmp.eq.s32.totalorder %s15, 0
      %p57 = por %p55, %p56
      %p58 = scmp.ne.s32.totalorder %s44, %s45
      %p59 = scmp.eq.s32.totalorder %s16, 7
      %p60 = por %p58, %p59
      %p62 = scmp.ne.s32.totalorder %s45, %s61
      %p63 = scmp.eq.s32.totalorder %s16, 0
      %p64 = por %p62, %p63
      %s65 = ssub.s32 %s17, %s36
      %s66 = ssub.s32 %s19, %s28
      %s67 = sor.u32 %s65, %s66
      %p68 = scmp.eq.s32.totalorder %s67, 0
      %s70 = sadd.s32 %s69, 1
      %s71 = scalar_select %p68, %s69, %s70
      %p74 = pneg %p68
      %p75 = scmp.eq.s32.totalorder %s10, 7
      %p76 = por %p74, %p75
      %p77 = scmp.ne.s32.totalorder %s69, %s72
      %p78 = scmp.eq.s32.totalorder %s10, 0
      %p79 = por %p77, %p78
      %p80 = scmp.ne.s32.totalorder %s69, %s72
      %p81 = scmp.eq.s32.totalorder %s15, 7
      %p82 = por %p80, %p81
      %p83 = scmp.ne.s32.totalorder %s72, %s73
      %p84 = scmp.eq.s32.totalorder %s15, 0
      %p85 = por %p83, %p84
      %p86 = scmp.ne.s32.totalorder %s72, %s73
      %p87 = scmp.eq.s32.totalorder %s16, 7
      %p88 = por %p86, %p87
      %p90 = scmp.ne.s32.totalorder %s73, %s89
      %p91 = scmp.eq.s32.totalorder %s16, 0
      %p92 = por %p90, %p91
      %s93 = ssub.s32 %s19, %s28
      %s94 = ssub.s32 %s18, %s32
      %s95 = sor.u32 %s93, %s94
      %p96 = scmp.eq.s32.totalorder %s95, 0
      %s98 = sadd.s32 %s97, 1
      %s99 = scalar_select %p96, %s97, %s98
      %p102 = pneg %p96
      %p103 = scmp.eq.s32.totalorder %s10, 7
      %p104 = por %p102, %p103
      %p105 = scmp.ne.s32.totalorder %s97, %s100
      %p106 = scmp.eq.s32.totalorder %s10, 0
      %p107 = por %p105, %p106
      %p108 = scmp.ne.s32.totalorder %s97, %s100
      %p109 = scmp.eq.s32.totalorder %s15, 7
      %p110 = por %p108, %p109
      %p111 = scmp.ne.s32.totalorder %s100, %s101
      %p112 = scmp.eq.s32.totalorder %s15, 0
      %p113 = por %p111, %p112
      %p114 = scmp.ne.s32.totalorder %s100, %s101
      %p115 = scmp.eq.s32.totalorder %s16, 7
      %p116 = por %p114, %p115
      %p118 = scmp.ne.s32.totalorder %s101, %s117
      %p119 = scmp.eq.s32.totalorder %s16, 0
      %p120 = por %p118, %p119
      %s121 = ssub.s32 %s18, %s32
      %p122 = scmp.eq.s32.totalorder %s121, 0
      %s124 = sadd.s32 %s123, 1
      %s125 = scalar_select %p122, %s123, %s124
      %p128 = pneg %p122
      %p129 = scmp.eq.s32.totalorder %s10, 7
      %p130 = por %p128, %p129
      %p131 = scmp.ne.s32.totalorder %s123, %s126
      %p132 = scmp.eq.s32.totalorder %s10, 0
      %p133 = por %p131, %p132
      %p134 = scmp.ne.s32.totalorder %s123, %s126
      %p135 = scmp.eq.s32.totalorder %s15, 7
      %p136 = por %p134, %p135
      %p137 = scmp.ne.s32.totalorder %s126, %s127
      %p138 = scmp.eq.s32.totalorder %s15, 0
      %p139 = por %p137, %p138
      %p140 = scmp.ne.s32.totalorder %s126, %s127
      %p141 = scmp.eq.s32.totalorder %s16, 7
      %p142 = por %p140, %p141
      %p144 = scmp.ne.s32.totalorder %s127, %s143
      %p145 = scmp.eq.s32.totalorder %s16, 0
      %p146 = por %p144, %p145
      %s147 = ssub.s32 %s17, %s36
      %s148 = ssub.s32 %s18, %s32
      %s149 = sor.u32 %s147, %s148
      %p150 = scmp.eq.s32.totalorder %s149, 0
      %s152 = sadd.s32 %s151, 1
      %s153 = scalar_select %p150, %s151, %s152
      %p156 = pneg %p150
      %p157 = scmp.eq.s32.totalorder %s10, 7
      %p158 = por %p156, %p157
      %p159 = scmp.ne.s32.totalorder %s151, %s154
      %p160 = scmp.eq.s32.totalorder %s10, 0
      %p161 = por %p159, %p160
      %p162 = scmp.ne.s32.totalorder %s151, %s154
      %p163 = scmp.eq.s32.totalorder %s15, 7
      %p164 = por %p162, %p163
      %p165 = scmp.ne.s32.totalorder %s154, %s155
      %p166 = scmp.eq.s32.totalorder %s15, 0
      %p167 = por %p165, %p166
      %p168 = scmp.ne.s32.totalorder %s154, %s155
      %p169 = scmp.eq.s32.totalorder %s16, 7
      %p170 = por %p168, %p169
      %p172 = scmp.ne.s32.totalorder %s155, %s171
      %p173 = scmp.eq.s32.totalorder %s16, 0
      %p174 = por %p172, %p173
      %p175 = scmp.le.s32.totalorder 1, %s10
      %p176 = scmp.lt.s32.totalorder %s10, 9
      %p177 = pnand %p175, %p176
      %p178 = pneg %p177
      // Predicated region
      $region9: #{run.2} parent=5 // pred_check
        _
      $region10: #{run.2} parent=5 // pred_check_branch
        %180 = sbr.rel (%p177) target = $region12
      $region11: #{run.2} parent=5 // pred_region
        %s181 = ssub.s32 %s10, 1
      $region12: #{run.2} parent=5 // pred_fallthru
        _
      %p182 = scmp.lt.s32.totalorder %s10, 8
      // Predicated region
      $region13: #{run.2} parent=5 // pred_check
        %p183 = pneg %p182
      $region14: #{run.2} parent=5 // pred_check_branch
        %185 = sbr.rel (%p183) target = $region16
      $region15: #{run.2} parent=5 // pred_region
        // Predicated region
        $region17: #{run.2} parent=15 // pred_check
          %p186 = pneg %p51
        $region18: #{run.2} parent=15 // pred_check_branch
          %188 = sbr.rel (%p186) target = $region20
        $region19: #{run.2} parent=15 // pred_region
          %s189 = sand.u32 %s41, 1
          %s190 = sand.u32 %s41, 1
          %s191 = smul.addr %s190, 64
          %s192 = scalar_lea.vmem [#allocation4], %s191
          %s193 = smul.u32 16, %s17
          %s194 = smul.addr %s193, 2
          %s195 = sadd.s32 %s19, %s194
          %s196 = smul.addr %s195, 4
          %s197 = scalar_lea.vmem %s0, %s196
          // Predicated region
          $region21: #{run.2} parent=19 // pred_check
            _
          $region22: #{run.2} parent=19 // pred_check_branch
            %199 = sbr.rel (0) target = $region24
          $region23: #{run.2} parent=19 // pred_region
            // Predicated region
            $region25: #{run.2} parent=23 // pred_check
              _
            $region26: #{run.2} parent=23 // pred_check_branch
              %201 = sbr.rel target = $region28
            $region27: #{run.2} parent=23 // pred_region
              // Predicated region
              $region40: #{run.2} parent=27 // pred_check
                _
              $region41: #{run.2} parent=27 // pred_check_branch
                %247 = sbr.rel (0) target = $region43
              $region42: #{run.2} parent=27 // pred_region
                loop: start=0, step=1, limit=1
                $region44: #{run.2} parent=42 // loop_pre_header
                  _
                $region45: #{run.2} parent=42 // loop_header
                  %s249 = sphi 0, %s253
                  %p250 = scmp.ge.s32.totalorder %s249, 1
                  %s254 = sphi %s197, %s197
                  %s255 = sphi %s192, %s192
                $region46: #{run.2} parent=42 // loop_header_branch
                  %252 = sbr.rel (%p250) target = $region50
                $region47: #{run.2} parent=42 // loop_body
                  _
                $region48: #{run.2} parent=42 // loop_footer
                  %s253 = sadd.s32 1, %s249
                $region49: #{run.2} parent=42 // loop_footer_branch
                  %248 = sbr.rel target = $region45
                $region50: #{run.2} parent=42 // loop_exit
                  _
                %s257 = ssub.s32 16, 1
                loop: start=0, step=1, limit=1
                $region51: #{run.2} parent=42 // loop_pre_header
                  _
                $region52: #{run.2} parent=42 // loop_header
                  %s259 = sphi 0, %s263
                  %p260 = scmp.ge.s32.totalorder %s259, 1
                  %s264 = sphi %s197, %s197
                  %s265 = sphi %s192, %s192
                $region53: #{run.2} parent=42 // loop_header_branch
                  %262 = sbr.rel (%p260) target = $region57
                $region54: #{run.2} parent=42 // loop_body
                  %v266 = vld [vmem:[%s264] sm:%s257]
                  %267 = vst [vmem:[%s265] sm:%s257] %v266
                  %v268 = vld [vmem:[%s264 + $0x8] sm:%s257]
                  %269 = vst [vmem:[%s265 + $0x4] sm:%s257] %v268
                  %v270 = vld [vmem:[%s264 + $0x10] sm:%s257]
                  %271 = vst [vmem:[%s265 + $0x8] sm:%s257] %v270
                  %v272 = vld [vmem:[%s264 + $0x18] sm:%s257]
                  %273 = vst [vmem:[%s265 + $0xc] sm:%s257] %v272
                  %v274 = vld [vmem:[%s264 + $0x20] sm:%s257]
                  %275 = vst [vmem:[%s265 + $0x10] sm:%s257] %v274
                  %v276 = vld [vmem:[%s264 + $0x28] sm:%s257]
                  %277 = vst [vmem:[%s265 + $0x14] sm:%s257] %v276
                  %v278 = vld [vmem:[%s264 + $0x30] sm:%s257]
                  %279 = vst [vmem:[%s265 + $0x18] sm:%s257] %v278
                  %v280 = vld [vmem:[%s264 + $0x38] sm:%s257]
                  %281 = vst [vmem:[%s265 + $0x1c] sm:%s257] %v280
                  %v282 = vld [vmem:[%s264 + $0x40] sm:%s257]
                  %283 = vst [vmem:[%s265 + $0x20] sm:%s257] %v282
                  %v284 = vld [vmem:[%s264 + $0x48] sm:%s257]
                  %285 = vst [vmem:[%s265 + $0x24] sm:%s257] %v284
                  %v286 = vld [vmem:[%s264 + $0x50] sm:%s257]
                  %287 = vst [vmem:[%s265 + $0x28] sm:%s257] %v286
                  %v288 = vld [vmem:[%s264 + $0x58] sm:%s257]
                  %289 = vst [vmem:[%s265 + $0x2c] sm:%s257] %v288
                  %v290 = vld [vmem:[%s264 + $0x60] sm:%s257]
                  %291 = vst [vmem:[%s265 + $0x30] sm:%s257] %v290
                  %v292 = vld [vmem:[%s264 + $0x68] sm:%s257]
                  %293 = vst [vmem:[%s265 + $0x34] sm:%s257] %v292
                  %v294 = vld [vmem:[%s264 + $0x70] sm:%s257]
                  %295 = vst [vmem:[%s265 + $0x38] sm:%s257] %v294
                  %v296 = vld [vmem:[%s264 + $0x78] sm:%s257]
                  %297 = vst [vmem:[%s265 + $0x3c] sm:%s257] %v296
                $region55: #{run.2} parent=42 // loop_footer
                  %s263 = sadd.s32 1, %s259
                $region56: #{run.2} parent=42 // loop_footer_branch
                  %258 = sbr.rel target = $region52
                $region57: #{run.2} parent=42 // loop_exit
                  _
              $region43: #{run.2} parent=27 // pred_fallthru
                _
            $region28: #{run.2} parent=23 // pred_fallthru
              _
            // Predicated region
            $region29: #{run.2} parent=23 // pred_check
              _
            $region30: #{run.2} parent=23 // pred_check_branch
              %203 = sbr.rel (0) target = $region32
            $region31: #{run.2} parent=23 // pred_region
              %s205 = ssub.s32 16, 1
              loop: start=0, step=1, limit=1
              $region33: #{run.2} parent=31 // loop_pre_header
                _
              $region34: #{run.2} parent=31 // loop_header
                %s207 = sphi 0, %s211
                %p208 = scmp.ge.s32.totalorder %s207, 1
                %s212 = sphi %s197, %s197
                %s213 = sphi %s192, %s192
              $region35: #{run.2} parent=31 // loop_header_branch
                %210 = sbr.rel (%p208) target = $region39
              $region36: #{run.2} parent=31 // loop_body
                %v214 = vld [vmem:[%s212] sm:%s205]
                %215 = vst [vmem:[%s213] sm:%s205] %v214
                %v216 = vld [vmem:[%s212 + $0x8] sm:%s205]
                %217 = vst [vmem:[%s213 + $0x4] sm:%s205] %v216
                %v218 = vld [vmem:[%s212 + $0x10] sm:%s205]
                %219 = vst [vmem:[%s213 + $0x8] sm:%s205] %v218
                %v220 = vld [vmem:[%s212 + $0x18] sm:%s205]
                %221 = vst [vmem:[%s213 + $0xc] sm:%s205] %v220
                %v222 = vld [vmem:[%s212 + $0x20] sm:%s205]
                %223 = vst [vmem:[%s213 + $0x10] sm:%s205] %v222
                %v224 = vld [vmem:[%s212 + $0x28] sm:%s205]
                %225 = vst [vmem:[%s213 + $0x14] sm:%s205] %v224
                %v226 = vld [vmem:[%s212 + $0x30] sm:%s205]
                %227 = vst [vmem:[%s213 + $0x18] sm:%s205] %v226
                %v228 = vld [vmem:[%s212 + $0x38] sm:%s205]
                %229 = vst [vmem:[%s213 + $0x1c] sm:%s205] %v228
                %v230 = vld [vmem:[%s212 + $0x40] sm:%s205]
                %231 = vst [vmem:[%s213 + $0x20] sm:%s205] %v230
                %v232 = vld [vmem:[%s212 + $0x48] sm:%s205]
                %233 = vst [vmem:[%s213 + $0x24] sm:%s205] %v232
                %v234 = vld [vmem:[%s212 + $0x50] sm:%s205]
                %235 = vst [vmem:[%s213 + $0x28] sm:%s205] %v234
                %v236 = vld [vmem:[%s212 + $0x58] sm:%s205]
                %237 = vst [vmem:[%s213 + $0x2c] sm:%s205] %v236
                %v238 = vld [vmem:[%s212 + $0x60] sm:%s205]
                %239 = vst [vmem:[%s213 + $0x30] sm:%s205] %v238
                %v240 = vld [vmem:[%s212 + $0x68] sm:%s205]
                %241 = vst [vmem:[%s213 + $0x34] sm:%s205] %v240
                %v242 = vld [vmem:[%s212 + $0x70] sm:%s205]
                %243 = vst [vmem:[%s213 + $0x38] sm:%s205] %v242
                %v244 = vld [vmem:[%s212 + $0x78] sm:%s205]
                %245 = vst [vmem:[%s213 + $0x3c] sm:%s205] %v244
              $region37: #{run.2} parent=31 // loop_footer
                %s211 = sadd.s32 1, %s207
              $region38: #{run.2} parent=31 // loop_footer_branch
                %206 = sbr.rel target = $region34
              $region39: #{run.2} parent=31 // loop_exit
                _
            $region32: #{run.2} parent=23 // pred_fallthru
              _
          $region24: #{run.2} parent=19 // pred_fallthru
            _
          %298 = vnop
        $region20: #{run.2} parent=15 // pred_fallthru
          _
        // Predicated region
        $region58: #{run.2} parent=15 // pred_check
          %p299 = pneg %p79
        $region59: #{run.2} parent=15 // pred_check_branch
          %301 = sbr.rel (%p299) target = $region61
        $region60: #{run.2} parent=15 // pred_region
          %s302 = sand.u32 %s69, 1
          %s303 = sand.u32 %s69, 1
          %s304 = smul.addr %s303, 64
          %s305 = scalar_lea.vmem [#allocation5], %s304
          %s306 = smul.u32 16, %s17
          %s307 = smul.addr %s306, 2
          %s308 = sadd.s32 %s19, %s307
          %s309 = smul.addr %s308, 4
          %s310 = scalar_lea.vmem %s1, %s309
          // Predicated region
          $region62: #{run.2} parent=60 // pred_check
            _
          $region63: #{run.2} parent=60 // pred_check_branch
            %312 = sbr.rel (0) target = $region65
          $region64: #{run.2} parent=60 // pred_region
            // Predicated region
            $region66: #{run.2} parent=64 // pred_check
              _
            $region67: #{run.2} parent=64 // pred_check_branch
              %314 = sbr.rel target = $region69
            $region68: #{run.2} parent=64 // pred_region
              // Predicated region
              $region81: #{run.2} parent=68 // pred_check
                _
              $region82: #{run.2} parent=68 // pred_check_branch
                %360 = sbr.rel (0) target = $region84
              $region83: #{run.2} parent=68 // pred_region
                loop: start=0, step=1, limit=1
                $region85: #{run.2} parent=83 // loop_pre_header
                  _
                $region86: #{run.2} parent=83 // loop_header
                  %s362 = sphi 0, %s366
                  %p363 = scmp.ge.s32.totalorder %s362, 1
                  %s367 = sphi %s310, %s310
                  %s368 = sphi %s305, %s305
                $region87: #{run.2} parent=83 // loop_header_branch
                  %365 = sbr.rel (%p363) target = $region91
                $region88: #{run.2} parent=83 // loop_body
                  _
                $region89: #{run.2} parent=83 // loop_footer
                  %s366 = sadd.s32 1, %s362
                $region90: #{run.2} parent=83 // loop_footer_branch
                  %361 = sbr.rel target = $region86
                $region91: #{run.2} parent=83 // loop_exit
                  _
                %s370 = ssub.s32 16, 1
                loop: start=0, step=1, limit=1
                $region92: #{run.2} parent=83 // loop_pre_header
                  _
                $region93: #{run.2} parent=83 // loop_header
                  %s372 = sphi 0, %s376
                  %p373 = scmp.ge.s32.totalorder %s372, 1
                  %s377 = sphi %s310, %s310
                  %s378 = sphi %s305, %s305
                $region94: #{run.2} parent=83 // loop_header_branch
                  %375 = sbr.rel (%p373) target = $region98
                $region95: #{run.2} parent=83 // loop_body
                  %v379 = vld [vmem:[%s377] sm:%s370]
                  %380 = vst [vmem:[%s378] sm:%s370] %v379
                  %v381 = vld [vmem:[%s377 + $0x8] sm:%s370]
                  %382 = vst [vmem:[%s378 + $0x4] sm:%s370] %v381
                  %v383 = vld [vmem:[%s377 + $0x10] sm:%s370]
                  %384 = vst [vmem:[%s378 + $0x8] sm:%s370] %v383
                  %v385 = vld [vmem:[%s377 + $0x18] sm:%s370]
                  %386 = vst [vmem:[%s378 + $0xc] sm:%s370] %v385
                  %v387 = vld [vmem:[%s377 + $0x20] sm:%s370]
                  %388 = vst [vmem:[%s378 + $0x10] sm:%s370] %v387
                  %v389 = vld [vmem:[%s377 + $0x28] sm:%s370]
                  %390 = vst [vmem:[%s378 + $0x14] sm:%s370] %v389
                  %v391 = vld [vmem:[%s377 + $0x30] sm:%s370]
                  %392 = vst [vmem:[%s378 + $0x18] sm:%s370] %v391
                  %v393 = vld [vmem:[%s377 + $0x38] sm:%s370]
                  %394 = vst [vmem:[%s378 + $0x1c] sm:%s370] %v393
                  %v395 = vld [vmem:[%s377 + $0x40] sm:%s370]
                  %396 = vst [vmem:[%s378 + $0x20] sm:%s370] %v395
                  %v397 = vld [vmem:[%s377 + $0x48] sm:%s370]
                  %398 = vst [vmem:[%s378 + $0x24] sm:%s370] %v397
                  %v399 = vld [vmem:[%s377 + $0x50] sm:%s370]
                  %400 = vst [vmem:[%s378 + $0x28] sm:%s370] %v399
                  %v401 = vld [vmem:[%s377 + $0x58] sm:%s370]
                  %402 = vst [vmem:[%s378 + $0x2c] sm:%s370] %v401
                  %v403 = vld [vmem:[%s377 + $0x60] sm:%s370]
                  %404 = vst [vmem:[%s378 + $0x30] sm:%s370] %v403
                  %v405 = vld [vmem:[%s377 + $0x68] sm:%s370]
                  %406 = vst [vmem:[%s378 + $0x34] sm:%s370] %v405
                  %v407 = vld [vmem:[%s377 + $0x70] sm:%s370]
                  %408 = vst [vmem:[%s378 + $0x38] sm:%s370] %v407
                  %v409 = vld [vmem:[%s377 + $0x78] sm:%s370]
                  %410 = vst [vmem:[%s378 + $0x3c] sm:%s370] %v409
                $region96: #{run.2} parent=83 // loop_footer
                  %s376 = sadd.s32 1, %s372
                $region97: #{run.2} parent=83 // loop_footer_branch
                  %371 = sbr.rel target = $region93
                $region98: #{run.2} parent=83 // loop_exit
                  _
              $region84: #{run.2} parent=68 // pred_fallthru
                _
            $region69: #{run.2} parent=64 // pred_fallthru
              _
            // Predicated region
            $region70: #{run.2} parent=64 // pred_check
              _
            $region71: #{run.2} parent=64 // pred_check_branch
              %316 = sbr.rel (0) target = $region73
            $region72: #{run.2} parent=64 // pred_region
              %s318 = ssub.s32 16, 1
              loop: start=0, step=1, limit=1
              $region74: #{run.2} parent=72 // loop_pre_header
                _
              $region75: #{run.2} parent=72 // loop_header
                %s320 = sphi 0, %s324
                %p321 = scmp.ge.s32.totalorder %s320, 1
                %s325 = sphi %s310, %s310
                %s326 = sphi %s305, %s305
              $region76: #{run.2} parent=72 // loop_header_branch
                %323 = sbr.rel (%p321) target = $region80
              $region77: #{run.2} parent=72 // loop_body
                %v327 = vld [vmem:[%s325] sm:%s318]
                %328 = vst [vmem:[%s326] sm:%s318] %v327
                %v329 = vld [vmem:[%s325 + $0x8] sm:%s318]
                %330 = vst [vmem:[%s326 + $0x4] sm:%s318] %v329
                %v331 = vld [vmem:[%s325 + $0x10] sm:%s318]
                %332 = vst [vmem:[%s326 + $0x8] sm:%s318] %v331
                %v333 = vld [vmem:[%s325 + $0x18] sm:%s318]
                %334 = vst [vmem:[%s326 + $0xc] sm:%s318] %v333
                %v335 = vld [vmem:[%s325 + $0x20] sm:%s318]
                %336 = vst [vmem:[%s326 + $0x10] sm:%s318] %v335
                %v337 = vld [vmem:[%s325 + $0x28] sm:%s318]
                %338 = vst [vmem:[%s326 + $0x14] sm:%s318] %v337
                %v339 = vld [vmem:[%s325 + $0x30] sm:%s318]
                %340 = vst [vmem:[%s326 + $0x18] sm:%s318] %v339
                %v341 = vld [vmem:[%s325 + $0x38] sm:%s318]
                %342 = vst [vmem:[%s326 + $0x1c] sm:%s318] %v341
                %v343 = vld [vmem:[%s325 + $0x40] sm:%s318]
                %344 = vst [vmem:[%s326 + $0x20] sm:%s318] %v343
                %v345 = vld [vmem:[%s325 + $0x48] sm:%s318]
                %346 = vst [vmem:[%s326 + $0x24] sm:%s318] %v345
                %v347 = vld [vmem:[%s325 + $0x50] sm:%s318]
                %348 = vst [vmem:[%s326 + $0x28] sm:%s318] %v347
                %v349 = vld [vmem:[%s325 + $0x58] sm:%s318]
                %350 = vst [vmem:[%s326 + $0x2c] sm:%s318] %v349
                %v351 = vld [vmem:[%s325 + $0x60] sm:%s318]
                %352 = vst [vmem:[%s326 + $0x30] sm:%s318] %v351
                %v353 = vld [vmem:[%s325 + $0x68] sm:%s318]
                %354 = vst [vmem:[%s326 + $0x34] sm:%s318] %v353
                %v355 = vld [vmem:[%s325 + $0x70] sm:%s318]
                %356 = vst [vmem:[%s326 + $0x38] sm:%s318] %v355
                %v357 = vld [vmem:[%s325 + $0x78] sm:%s318]
                %358 = vst [vmem:[%s326 + $0x3c] sm:%s318] %v357
              $region78: #{run.2} parent=72 // loop_footer
                %s324 = sadd.s32 1, %s320
              $region79: #{run.2} parent=72 // loop_footer_branch
                %319 = sbr.rel target = $region75
              $region80: #{run.2} parent=72 // loop_exit
                _
            $region73: #{run.2} parent=64 // pred_fallthru
              _
          $region65: #{run.2} parent=60 // pred_fallthru
            _
          %411 = vnop
        $region61: #{run.2} parent=15 // pred_fallthru
          _
        // Predicated region
        $region99: #{run.2} parent=15 // pred_check
          %p412 = pneg %p107
        $region100: #{run.2} parent=15 // pred_check_branch
          %414 = sbr.rel (%p412) target = $region102
        $region101: #{run.2} parent=15 // pred_region
          %s415 = sand.u32 %s97, 1
          %s416 = sand.u32 %s97, 1
          %s417 = smul.addr %s416, 64
          %s418 = scalar_lea.vmem [#allocation6], %s417
          %s419 = smul.u32 16, %s19
          %s420 = smul.addr %s419, 2
          %s421 = sadd.s32 %s18, %s420
          %s422 = smul.addr %s421, 4
          %s423 = scalar_lea.vmem %s2, %s422
          // Predicated region
          $region103: #{run.2} parent=101 // pred_check
            _
          $region104: #{run.2} parent=101 // pred_check_branch
            %425 = sbr.rel (0) target = $region106
          $region105: #{run.2} parent=101 // pred_region
            // Predicated region
            $region107: #{run.2} parent=105 // pred_check
              _
            $region108: #{run.2} parent=105 // pred_check_branch
              %427 = sbr.rel target = $region110
            $region109: #{run.2} parent=105 // pred_region
              // Predicated region
              $region122: #{run.2} parent=109 // pred_check
                _
              $region123: #{run.2} parent=109 // pred_check_branch
                %473 = sbr.rel (0) target = $region125
              $region124: #{run.2} parent=109 // pred_region
                loop: start=0, step=1, limit=1
                $region126: #{run.2} parent=124 // loop_pre_header
                  _
                $region127: #{run.2} parent=124 // loop_header
                  %s475 = sphi 0, %s479
                  %p476 = scmp.ge.s32.totalorder %s475, 1
                  %s480 = sphi %s423, %s423
                  %s481 = sphi %s418, %s418
                $region128: #{run.2} parent=124 // loop_header_branch
                  %478 = sbr.rel (%p476) target = $region132
                $region129: #{run.2} parent=124 // loop_body
                  _
                $region130: #{run.2} parent=124 // loop_footer
                  %s479 = sadd.s32 1, %s475
                $region131: #{run.2} parent=124 // loop_footer_branch
                  %474 = sbr.rel target = $region127
                $region132: #{run.2} parent=124 // loop_exit
                  _
                %s483 = ssub.s32 16, 1
                loop: start=0, step=1, limit=1
                $region133: #{run.2} parent=124 // loop_pre_header
                  _
                $region134: #{run.2} parent=124 // loop_header
                  %s485 = sphi 0, %s489
                  %p486 = scmp.ge.s32.totalorder %s485, 1
                  %s490 = sphi %s423, %s423
                  %s491 = sphi %s418, %s418
                $region135: #{run.2} parent=124 // loop_header_branch
                  %488 = sbr.rel (%p486) target = $region139
                $region136: #{run.2} parent=124 // loop_body
                  %v492 = vld [vmem:[%s490] sm:%s483]
                  %493 = vst [vmem:[%s491] sm:%s483] %v492
                  %v494 = vld [vmem:[%s490 + $0x8] sm:%s483]
                  %495 = vst [vmem:[%s491 + $0x4] sm:%s483] %v494
                  %v496 = vld [vmem:[%s490 + $0x10] sm:%s483]
                  %497 = vst [vmem:[%s491 + $0x8] sm:%s483] %v496
                  %v498 = vld [vmem:[%s490 + $0x18] sm:%s483]
                  %499 = vst [vmem:[%s491 + $0xc] sm:%s483] %v498
                  %v500 = vld [vmem:[%s490 + $0x20] sm:%s483]
                  %501 = vst [vmem:[%s491 + $0x10] sm:%s483] %v500
                  %v502 = vld [vmem:[%s490 + $0x28] sm:%s483]
                  %503 = vst [vmem:[%s491 + $0x14] sm:%s483] %v502
                  %v504 = vld [vmem:[%s490 + $0x30] sm:%s483]
                  %505 = vst [vmem:[%s491 + $0x18] sm:%s483] %v504
                  %v506 = vld [vmem:[%s490 + $0x38] sm:%s483]
                  %507 = vst [vmem:[%s491 + $0x1c] sm:%s483] %v506
                  %v508 = vld [vmem:[%s490 + $0x40] sm:%s483]
                  %509 = vst [vmem:[%s491 + $0x20] sm:%s483] %v508
                  %v510 = vld [vmem:[%s490 + $0x48] sm:%s483]
                  %511 = vst [vmem:[%s491 + $0x24] sm:%s483] %v510
                  %v512 = vld [vmem:[%s490 + $0x50] sm:%s483]
                  %513 = vst [vmem:[%s491 + $0x28] sm:%s483] %v512
                  %v514 = vld [vmem:[%s490 + $0x58] sm:%s483]
                  %515 = vst [vmem:[%s491 + $0x2c] sm:%s483] %v514
                  %v516 = vld [vmem:[%s490 + $0x60] sm:%s483]
                  %517 = vst [vmem:[%s491 + $0x30] sm:%s483] %v516
                  %v518 = vld [vmem:[%s490 + $0x68] sm:%s483]
                  %519 = vst [vmem:[%s491 + $0x34] sm:%s483] %v518
                  %v520 = vld [vmem:[%s490 + $0x70] sm:%s483]
                  %521 = vst [vmem:[%s491 + $0x38] sm:%s483] %v520
                  %v522 = vld [vmem:[%s490 + $0x78] sm:%s483]
                  %523 = vst [vmem:[%s491 + $0x3c] sm:%s483] %v522
                $region137: #{run.2} parent=124 // loop_footer
                  %s489 = sadd.s32 1, %s485
                $region138: #{run.2} parent=124 // loop_footer_branch
                  %484 = sbr.rel target = $region134
                $region139: #{run.2} parent=124 // loop_exit
                  _
              $region125: #{run.2} parent=109 // pred_fallthru
                _
            $region110: #{run.2} parent=105 // pred_fallthru
              _
            // Predicated region
            $region111: #{run.2} parent=105 // pred_check
              _
            $region112: #{run.2} parent=105 // pred_check_branch
              %429 = sbr.rel (0) target = $region114
            $region113: #{run.2} parent=105 // pred_region
              %s431 = ssub.s32 16, 1
              loop: start=0, step=1, limit=1
              $region115: #{run.2} parent=113 // loop_pre_header
                _
              $region116: #{run.2} parent=113 // loop_header
                %s433 = sphi 0, %s437
                %p434 = scmp.ge.s32.totalorder %s433, 1
                %s438 = sphi %s423, %s423
                %s439 = sphi %s418, %s418
              $region117: #{run.2} parent=113 // loop_header_branch
                %436 = sbr.rel (%p434) target = $region121
              $region118: #{run.2} parent=113 // loop_body
                %v440 = vld [vmem:[%s438] sm:%s431]
                %441 = vst [vmem:[%s439] sm:%s431] %v440
                %v442 = vld [vmem:[%s438 + $0x8] sm:%s431]
                %443 = vst [vmem:[%s439 + $0x4] sm:%s431] %v442
                %v444 = vld [vmem:[%s438 + $0x10] sm:%s431]
                %445 = vst [vmem:[%s439 + $0x8] sm:%s431] %v444
                %v446 = vld [vmem:[%s438 + $0x18] sm:%s431]
                %447 = vst [vmem:[%s439 + $0xc] sm:%s431] %v446
                %v448 = vld [vmem:[%s438 + $0x20] sm:%s431]
                %449 = vst [vmem:[%s439 + $0x10] sm:%s431] %v448
                %v450 = vld [vmem:[%s438 + $0x28] sm:%s431]
                %451 = vst [vmem:[%s439 + $0x14] sm:%s431] %v450
                %v452 = vld [vmem:[%s438 + $0x30] sm:%s431]
                %453 = vst [vmem:[%s439 + $0x18] sm:%s431] %v452
                %v454 = vld [vmem:[%s438 + $0x38] sm:%s431]
                %455 = vst [vmem:[%s439 + $0x1c] sm:%s431] %v454
                %v456 = vld [vmem:[%s438 + $0x40] sm:%s431]
                %457 = vst [vmem:[%s439 + $0x20] sm:%s431] %v456
                %v458 = vld [vmem:[%s438 + $0x48] sm:%s431]
                %459 = vst [vmem:[%s439 + $0x24] sm:%s431] %v458
                %v460 = vld [vmem:[%s438 + $0x50] sm:%s431]
                %461 = vst [vmem:[%s439 + $0x28] sm:%s431] %v460
                %v462 = vld [vmem:[%s438 + $0x58] sm:%s431]
                %463 = vst [vmem:[%s439 + $0x2c] sm:%s431] %v462
                %v464 = vld [vmem:[%s438 + $0x60] sm:%s431]
                %465 = vst [vmem:[%s439 + $0x30] sm:%s431] %v464
                %v466 = vld [vmem:[%s438 + $0x68] sm:%s431]
                %467 = vst [vmem:[%s439 + $0x34] sm:%s431] %v466
                %v468 = vld [vmem:[%s438 + $0x70] sm:%s431]
                %469 = vst [vmem:[%s439 + $0x38] sm:%s431] %v468
                %v470 = vld [vmem:[%s438 + $0x78] sm:%s431]
                %471 = vst [vmem:[%s439 + $0x3c] sm:%s431] %v470
              $region119: #{run.2} parent=113 // loop_footer
                %s437 = sadd.s32 1, %s433
              $region120: #{run.2} parent=113 // loop_footer_branch
                %432 = sbr.rel target = $region116
              $region121: #{run.2} parent=113 // loop_exit
                _
            $region114: #{run.2} parent=105 // pred_fallthru
              _
          $region106: #{run.2} parent=101 // pred_fallthru
            _
          %524 = vnop
        $region102: #{run.2} parent=15 // pred_fallthru
          _
        // Predicated region
        $region140: #{run.2} parent=15 // pred_check
          %p525 = pneg %p133
        $region141: #{run.2} parent=15 // pred_check_branch
          %527 = sbr.rel (%p525) target = $region143
        $region142: #{run.2} parent=15 // pred_region
          %p528 = scmp.lt.s32.totalorder %s18, 1
          %s529 = scalar_select %p528, %s18, 1
          %s530 = scalar_lea.vmem %s3, %s529
        $region143: #{run.2} parent=15 // pred_fallthru
          _
      $region16: #{run.2} parent=5 // pred_fallthru
        _
      %p531 = scmp.le.s32.totalorder 1, %s10
      %p532 = scmp.lt.s32.totalorder %s10, 9
      %p533 = pnand %p531, %p532
      %p534 = pneg %p533
      // Predicated region
      $region144: #{run.2} parent=5 // pred_check
        _
      $region145: #{run.2} parent=5 // pred_check_branch
        %536 = sbr.rel (%p533) target = $region147
      $region146: #{run.2} parent=5 // pred_region
        %s537 = ssub.s32 %s10, 1
        %s538 = sand.u32 %s44, 1
        %s539 = sand.u32 %s44, 1
        %s540 = smul.addr %s539, 64
        %s541 = scalar_lea.vmem [#allocation4], %s540
        // Predicated region
        $region148: #{run.2} parent=146 // pred_check
          %p542 = pneg %p57
        $region149: #{run.2} parent=146 // pred_check_branch
          %544 = sbr.rel (%p542) target = $region151
        $region150: #{run.2} parent=146 // pred_region
          _
        $region151: #{run.2} parent=146 // pred_fallthru
          _
        %s545 = sand.u32 %s72, 1
        %s546 = sand.u32 %s72, 1
        %s547 = smul.addr %s546, 64
        %s548 = scalar_lea.vmem [#allocation5], %s547
        // Predicated region
        $region152: #{run.2} parent=146 // pred_check
          %p549 = pneg %p85
        $region153: #{run.2} parent=146 // pred_check_branch
          %551 = sbr.rel (%p549) target = $region155
        $region154: #{run.2} parent=146 // pred_region
          _
        $region155: #{run.2} parent=146 // pred_fallthru
          _
        %s552 = sand.u32 %s100, 1
        %s553 = sand.u32 %s100, 1
        %s554 = smul.addr %s553, 64
        %s555 = scalar_lea.vmem [#allocation6], %s554
        // Predicated region
        $region156: #{run.2} parent=146 // pred_check
          %p556 = pneg %p113
        $region157: #{run.2} parent=146 // pred_check_branch
          %558 = sbr.rel (%p556) target = $region159
        $region158: #{run.2} parent=146 // pred_region
          _
        $region159: #{run.2} parent=146 // pred_fallthru
          _
        %s559 = sand.u32 %s44, 1
        %s560 = sand.u32 %s44, 1
        %s561 = smul.addr %s560, 64
        %s562 = scalar_lea.vmem [#allocation4], %s561
        %p563 = pneg %p57
        %p564 = pneg %p54
        %s565 = sand.u32 %s72, 1
        %s566 = sand.u32 %s72, 1
        %s567 = smul.addr %s566, 64
        %s568 = scalar_lea.vmem [#allocation5], %s567
        %p569 = pneg %p85
        %p570 = pneg %p82
        %s571 = sand.u32 %s100, 1
        %s572 = sand.u32 %s100, 1
        %s573 = smul.addr %s572, 64
        %s574 = scalar_lea.vmem [#allocation6], %s573
        %p575 = pneg %p113
        %p576 = pneg %p110
        %p577 = scmp.lt.s32.totalorder %s21, 1
        %s578 = scalar_select %p577, %s21, 1
        %s579 = scalar_lea.vmem %s3, %s578
        %p580 = pneg %p139
        %p581 = pneg %p136
        %p582 = pneg %p167
        %p583 = pneg %p164
        %s584 = sand.u32 %s154, 1
        %s585 = sand.u32 %s154, 1
        %s586 = smul.addr %s585, 64
        %s587 = scalar_lea.vmem [#allocation7], %s586
        %s588 = smul.u32 16, %s20
        %s589 = smul.u32 16, %s20
        %s590 = smul.u32 16, %s22
        %p591 = scmp.lt.s32.totalorder %s21, 1
        %s592 = scalar_select %p591, %s21, 1
        %s593 = scalar_lea.vmem %s3, %s592
        %s594 = smul.u32 16, %s20
        %p595 = scmp.eq.s32.totalorder %s22, 0
        // Predicated region
        $region160: #{run.2} parent=146 // pred_check
          %p596 = pneg %p595
        $region161: #{run.2} parent=146 // pred_check_branch
          %598 = sbr.rel (%p596) target = $region163
        $region162: #{run.2} parent=146 // pred_region
          %599 = vst [vmem:[#allocation2] sm:$0xff] 0.0
          %600 = vst [vmem:[#allocation2 + $0x8] sm:$0xff] 0.0
          %601 = vst [vmem:[#allocation2 + $0x10] sm:$0xff] 0.0
          %602 = vst [vmem:[#allocation2 + $0x18] sm:$0xff] 0.0
          %603 = vst [vmem:[#allocation2 + $0x20] sm:$0xff] 0.0
          %604 = vst [vmem:[#allocation2 + $0x28] sm:$0xff] 0.0
          %605 = vst [vmem:[#allocation2 + $0x30] sm:$0xff] 0.0
          %606 = vst [vmem:[#allocation2 + $0x38] sm:$0xff] 0.0
          %607 = vst [vmem:[#allocation2 + $0x40] sm:$0xff] 0.0
          %608 = vst [vmem:[#allocation2 + $0x48] sm:$0xff] 0.0
          %609 = vst [vmem:[#allocation2 + $0x50] sm:$0xff] 0.0
          %610 = vst [vmem:[#allocation2 + $0x58] sm:$0xff] 0.0
          %611 = vst [vmem:[#allocation2 + $0x60] sm:$0xff] 0.0
          %612 = vst [vmem:[#allocation2 + $0x68] sm:$0xff] 0.0
          %613 = vst [vmem:[#allocation2 + $0x70] sm:$0xff] 0.0
          %614 = vst [vmem:[#allocation2 + $0x78] sm:$0xff] 0.0
          %615 = vst [vmem:[#allocation3] sm:$0xff] 0.0
          %616 = vst [vmem:[#allocation3 + $0x8] sm:$0xff] 0.0
          %617 = vst [vmem:[#allocation3 + $0x10] sm:$0xff] 0.0
          %618 = vst [vmem:[#allocation3 + $0x18] sm:$0xff] 0.0
          %619 = vst [vmem:[#allocation3 + $0x20] sm:$0xff] 0.0
          %620 = vst [vmem:[#allocation3 + $0x28] sm:$0xff] 0.0
          %621 = vst [vmem:[#allocation3 + $0x30] sm:$0xff] 0.0
          %622 = vst [vmem:[#allocation3 + $0x38] sm:$0xff] 0.0
          %623 = vst [vmem:[#allocation3 + $0x40] sm:$0xff] 0.0
          %624 = vst [vmem:[#allocation3 + $0x48] sm:$0xff] 0.0
          %625 = vst [vmem:[#allocation3 + $0x50] sm:$0xff] 0.0
          %626 = vst [vmem:[#allocation3 + $0x58] sm:$0xff] 0.0
          %627 = vst [vmem:[#allocation3 + $0x60] sm:$0xff] 0.0
          %628 = vst [vmem:[#allocation3 + $0x68] sm:$0xff] 0.0
          %629 = vst [vmem:[#allocation3 + $0x70] sm:$0xff] 0.0
          %630 = vst [vmem:[#allocation3 + $0x78] sm:$0xff] 0.0
        $region163: #{run.2} parent=146 // pred_fallthru
          _
        %v631 = vld [vmem:[%s555] sm:$0xf]
        %v632 = vld [vmem:[%s555 + $0x4] sm:$0xf]
        %v633 = vld [vmem:[%s555 + $0x8] sm:$0xf]
        %v634 = vld [vmem:[%s555 + $0xc] sm:$0xf]
        %v635 = vld [vmem:[%s555 + $0x10] sm:$0xf]
        %v636 = vld [vmem:[%s555 + $0x14] sm:$0xf]
        %v637 = vld [vmem:[%s555 + $0x18] sm:$0xf]
        %v638 = vld [vmem:[%s555 + $0x1c] sm:$0xf]
        %v639 = vld [vmem:[%s555 + $0x20] sm:$0xf]
        %v640 = vld [vmem:[%s555 + $0x24] sm:$0xf]
        %v641 = vld [vmem:[%s555 + $0x28] sm:$0xf]
        %v642 = vld [vmem:[%s555 + $0x2c] sm:$0xf]
        %v643 = vld [vmem:[%s555 + $0x30] sm:$0xf]
        %v644 = vld [vmem:[%s555 + $0x34] sm:$0xf]
        %v645 = vld [vmem:[%s555 + $0x38] sm:$0xf]
        %v646 = vld [vmem:[%s555 + $0x3c] sm:$0xf]
        %v647 = vld [vmem:[#allocation2] sm:$0xff]
        %v648 = vld [vmem:[#allocation2 + $0x8] sm:$0xff]
        %v649 = vld [vmem:[#allocation2 + $0x10] sm:$0xff]
        %v650 = vld [vmem:[#allocation2 + $0x18] sm:$0xff]
        %v651 = vld [vmem:[#allocation2 + $0x20] sm:$0xff]
        %v652 = vld [vmem:[#allocation2 + $0x28] sm:$0xff]
        %v653 = vld [vmem:[#allocation2 + $0x30] sm:$0xff]
        %v654 = vld [vmem:[#allocation2 + $0x38] sm:$0xff]
        %v655 = vld [vmem:[#allocation2 + $0x40] sm:$0xff]
        %v656 = vld [vmem:[#allocation2 + $0x48] sm:$0xff]
        %v657 = vld [vmem:[#allocation2 + $0x50] sm:$0xff]
        %v658 = vld [vmem:[#allocation2 + $0x58] sm:$0xff]
        %v659 = vld [vmem:[#allocation2 + $0x60] sm:$0xff]
        %v660 = vld [vmem:[#allocation2 + $0x68] sm:$0xff]
        %v661 = vld [vmem:[#allocation2 + $0x70] sm:$0xff]
        %v662 = vld [vmem:[#allocation2 + $0x78] sm:$0xff]
        %v663 = vld [vmem:[%s541] sm:$0xf]
        %v664 = vld [vmem:[%s541 + $0x4] sm:$0xf]
        %v665 = vld [vmem:[%s541 + $0x8] sm:$0xf]
        %v666 = vld [vmem:[%s541 + $0xc] sm:$0xf]
        %v667 = vld [vmem:[%s541 + $0x10] sm:$0xf]
        %v668 = vld [vmem:[%s541 + $0x14] sm:$0xf]
        %v669 = vld [vmem:[%s541 + $0x18] sm:$0xf]
        %v670 = vld [vmem:[%s541 + $0x1c] sm:$0xf]
        %v671 = vld [vmem:[%s541 + $0x20] sm:$0xf]
        %v672 = vld [vmem:[%s541 + $0x24] sm:$0xf]
        %v673 = vld [vmem:[%s541 + $0x28] sm:$0xf]
        %v674 = vld [vmem:[%s541 + $0x2c] sm:$0xf]
        %v675 = vld [vmem:[%s541 + $0x30] sm:$0xf]
        %v676 = vld [vmem:[%s541 + $0x34] sm:$0xf]
        %v677 = vld [vmem:[%s541 + $0x38] sm:$0xf]
        %v678 = vld [vmem:[%s541 + $0x3c] sm:$0xf]
        %v695 = vunpack.c.l.b16 %v663
        %v696 = vunpack.c.l.b16 %v664
        %v697 = vunpack.c.l.b16 %v665
        %v698 = vunpack.c.l.b16 %v666
        %v699 = vunpack.c.l.b16 %v667
        %v700 = vunpack.c.l.b16 %v668
        %v701 = vunpack.c.l.b16 %v669
        %v702 = vunpack.c.l.b16 %v670
        %v703 = vunpack.c.l.b16 %v671
        %v704 = vunpack.c.l.b16 %v672
        %v705 = vunpack.c.l.b16 %v673
        %v706 = vunpack.c.l.b16 %v674
        %v707 = vunpack.c.l.b16 %v675
        %v708 = vunpack.c.l.b16 %v676
        %v709 = vunpack.c.l.b16 %v677
        %v710 = vunpack.c.l.b16 %v678
        %v711 = vpack.c.b16 %v696, %v695
        %v712 = vpack.c.b16 %v698, %v697
        %v713 = vpack.c.b16 %v700, %v699
        %v714 = vpack.c.b16 %v702, %v701
        %v715 = vpack.c.b16 %v704, %v703
        %v716 = vpack.c.b16 %v706, %v705
        %v717 = vpack.c.b16 %v708, %v707
        %v718 = vpack.c.b16 %v710, %v709
        %v743 = vunpack.c.l.b16 %v631
        %v744 = vunpack.c.l.b16 %v632
        %v745 = vunpack.c.l.b16 %v633
        %v746 = vunpack.c.l.b16 %v634
        %v747 = vunpack.c.l.b16 %v635
        %v748 = vunpack.c.l.b16 %v636
        %v749 = vunpack.c.l.b16 %v637
        %v750 = vunpack.c.l.b16 %v638
        %v751 = vunpack.c.l.b16 %v639
        %v752 = vunpack.c.l.b16 %v640
        %v753 = vunpack.c.l.b16 %v641
        %v754 = vunpack.c.l.b16 %v642
        %v755 = vunpack.c.l.b16 %v643
        %v756 = vunpack.c.l.b16 %v644
        %v757 = vunpack.c.l.b16 %v645
        %v758 = vunpack.c.l.b16 %v646
        %v759 = vpack.c.b16 %v744, %v743
        %v760 = vpack.c.b16 %v746, %v745
        %v761 = vpack.c.b16 %v748, %v747
        %v762 = vpack.c.b16 %v750, %v749
        %v763 = vpack.c.b16 %v752, %v751
        %v764 = vpack.c.b16 %v754, %v753
        %v765 = vpack.c.b16 %v756, %v755
        %v766 = vpack.c.b16 %v758, %v757
        %775 = vmatpush.bf16.msra.mxu0 %v766
        %776 = vmatpush.bf16.msra.mxu0 %v765
        %777 = vmatpush.bf16.msra.mxu0 %v764
        %778 = vmatpush.bf16.msra.mxu0 %v763
        %779 = vmatpush.bf16.msra.mxu0 %v762
        %780 = vmatpush.bf16.msra.mxu0 %v761
        %781 = vmatpush.bf16.msra.mxu0 %v760
        %782 = vmatpush.bf16.msra.mxu0 %v759
        %783 = vmatmul.bf16.gmra.mxu0 %v711
        %v784 = vpop.f32.mrf.mxu0
        %v785 = vadd.f32 0.0, %v784
        %v786 = vpop.f32.mrf.mxu0
        %v787 = vadd.f32 0.0, %v786
        %788 = vmatmul.bf16.gmra.mxu0 %v712
        %v789 = vpop.f32.mrf.mxu0
        %v790 = vadd.f32 0.0, %v789
        %v791 = vpop.f32.mrf.mxu0
        %v792 = vadd.f32 0.0, %v791
        %793 = vmatmul.bf16.gmra.mxu0 %v713
        %v794 = vpop.f32.mrf.mxu0
        %v795 = vadd.f32 0.0, %v794
        %v796 = vpop.f32.mrf.mxu0
        %v797 = vadd.f32 0.0, %v796
        %798 = vmatmul.bf16.gmra.mxu0 %v714
        %v799 = vpop.f32.mrf.mxu0
        %v800 = vadd.f32 0.0, %v799
        %v801 = vpop.f32.mrf.mxu0
        %v802 = vadd.f32 0.0, %v801
        %803 = vmatmul.bf16.gmra.mxu0 %v715
        %v804 = vpop.f32.mrf.mxu0
        %v805 = vadd.f32 0.0, %v804
        %v806 = vpop.f32.mrf.mxu0
        %v807 = vadd.f32 0.0, %v806
        %808 = vmatmul.bf16.gmra.mxu0 %v716
        %v809 = vpop.f32.mrf.mxu0
        %v810 = vadd.f32 0.0, %v809
        %v811 = vpop.f32.mrf.mxu0
        %v812 = vadd.f32 0.0, %v811
        %813 = vmatmul.bf16.gmra.mxu0 %v717
        %v814 = vpop.f32.mrf.mxu0
        %v815 = vadd.f32 0.0, %v814
        %v816 = vpop.f32.mrf.mxu0
        %v817 = vadd.f32 0.0, %v816
        %818 = vmatmul.bf16.gmra.mxu0 %v718
        %v819 = vpop.f32.mrf.mxu0
        %v820 = vadd.f32 0.0, %v819
        %v821 = vpop.f32.mrf.mxu0
        %v822 = vadd.f32 0.0, %v821
        %823 = vdwg.mxu0
        %v824 = vadd.f32 %v647, %v785
        %v825 = vadd.f32 %v648, %v787
        %v826 = vadd.f32 %v649, %v790
        %v827 = vadd.f32 %v650, %v792
        %v828 = vadd.f32 %v651, %v795
        %v829 = vadd.f32 %v652, %v797
        %v830 = vadd.f32 %v653, %v800
        %v831 = vadd.f32 %v654, %v802
        %v832 = vadd.f32 %v655, %v805
        %v833 = vadd.f32 %v656, %v807
        %v834 = vadd.f32 %v657, %v810
        %v835 = vadd.f32 %v658, %v812
        %v836 = vadd.f32 %v659, %v815
        %v837 = vadd.f32 %v660, %v817
        %v838 = vadd.f32 %v661, %v820
        %v839 = vadd.f32 %v662, %v822
        %840 = vst [vmem:[#allocation2] sm:$0xff] %v824
        %841 = vst [vmem:[#allocation2 + $0x8] sm:$0xff] %v825
        %842 = vst [vmem:[#allocation2 + $0x10] sm:$0xff] %v826
        %843 = vst [vmem:[#allocation2 + $0x18] sm:$0xff] %v827
        %844 = vst [vmem:[#allocation2 + $0x20] sm:$0xff] %v828
        %845 = vst [vmem:[#allocation2 + $0x28] sm:$0xff] %v829
        %846 = vst [vmem:[#allocation2 + $0x30] sm:$0xff] %v830
        %847 = vst [vmem:[#allocation2 + $0x38] sm:$0xff] %v831
        %848 = vst [vmem:[#allocation2 + $0x40] sm:$0xff] %v832
        %849 = vst [vmem:[#allocation2 + $0x48] sm:$0xff] %v833
        %850 = vst [vmem:[#allocation2 + $0x50] sm:$0xff] %v834
        %851 = vst [vmem:[#allocation2 + $0x58] sm:$0xff] %v835
        %852 = vst [vmem:[#allocation2 + $0x60] sm:$0xff] %v836
        %853 = vst [vmem:[#allocation2 + $0x68] sm:$0xff] %v837
        %854 = vst [vmem:[#allocation2 + $0x70] sm:$0xff] %v838
        %855 = vst [vmem:[#allocation2 + $0x78] sm:$0xff] %v839
        %v856 = vld [vmem:[#allocation3] sm:$0xff]
        %v857 = vld [vmem:[#allocation3 + $0x8] sm:$0xff]
        %v858 = vld [vmem:[#allocation3 + $0x10] sm:$0xff]
        %v859 = vld [vmem:[#allocation3 + $0x18] sm:$0xff]
        %v860 = vld [vmem:[#allocation3 + $0x20] sm:$0xff]
        %v861 = vld [vmem:[#allocation3 + $0x28] sm:$0xff]
        %v862 = vld [vmem:[#allocation3 + $0x30] sm:$0xff]
        %v863 = vld [vmem:[#allocation3 + $0x38] sm:$0xff]
        %v864 = vld [vmem:[#allocation3 + $0x40] sm:$0xff]
        %v865 = vld [vmem:[#allocation3 + $0x48] sm:$0xff]
        %v866 = vld [vmem:[#allocation3 + $0x50] sm:$0xff]
        %v867 = vld [vmem:[#allocation3 + $0x58] sm:$0xff]
        %v868 = vld [vmem:[#allocation3 + $0x60] sm:$0xff]
        %v869 = vld [vmem:[#allocation3 + $0x68] sm:$0xff]
        %v870 = vld [vmem:[#allocation3 + $0x70] sm:$0xff]
        %v871 = vld [vmem:[#allocation3 + $0x78] sm:$0xff]
        %v872 = vld [vmem:[%s548] sm:$0xf]
        %v873 = vld [vmem:[%s548 + $0x4] sm:$0xf]
        %v874 = vld [vmem:[%s548 + $0x8] sm:$0xf]
        %v875 = vld [vmem:[%s548 + $0xc] sm:$0xf]
        %v876 = vld [vmem:[%s548 + $0x10] sm:$0xf]
        %v877 = vld [vmem:[%s548 + $0x14] sm:$0xf]
        %v878 = vld [vmem:[%s548 + $0x18] sm:$0xf]
        %v879 = vld [vmem:[%s548 + $0x1c] sm:$0xf]
        %v880 = vld [vmem:[%s548 + $0x20] sm:$0xf]
        %v881 = vld [vmem:[%s548 + $0x24] sm:$0xf]
        %v882 = vld [vmem:[%s548 + $0x28] sm:$0xf]
        %v883 = vld [vmem:[%s548 + $0x2c] sm:$0xf]
        %v884 = vld [vmem:[%s548 + $0x30] sm:$0xf]
        %v885 = vld [vmem:[%s548 + $0x34] sm:$0xf]
        %v886 = vld [vmem:[%s548 + $0x38] sm:$0xf]
        %v887 = vld [vmem:[%s548 + $0x3c] sm:$0xf]
        %v904 = vunpack.c.l.b16 %v872
        %v905 = vunpack.c.l.b16 %v873
        %v906 = vunpack.c.l.b16 %v874
        %v907 = vunpack.c.l.b16 %v875
        %v908 = vunpack.c.l.b16 %v876
        %v909 = vunpack.c.l.b16 %v877
        %v910 = vunpack.c.l.b16 %v878
        %v911 = vunpack.c.l.b16 %v879
        %v912 = vunpack.c.l.b16 %v880
        %v913 = vunpack.c.l.b16 %v881
        %v914 = vunpack.c.l.b16 %v882
        %v915 = vunpack.c.l.b16 %v883
        %v916 = vunpack.c.l.b16 %v884
        %v917 = vunpack.c.l.b16 %v885
        %v918 = vunpack.c.l.b16 %v886
        %v919 = vunpack.c.l.b16 %v887
        %v920 = vpack.c.b16 %v905, %v904
        %v921 = vpack.c.b16 %v907, %v906
        %v922 = vpack.c.b16 %v909, %v908
        %v923 = vpack.c.b16 %v911, %v910
        %v924 = vpack.c.b16 %v913, %v912
        %v925 = vpack.c.b16 %v915, %v914
        %v926 = vpack.c.b16 %v917, %v916
        %v927 = vpack.c.b16 %v919, %v918
        %936 = vmatpush.bf16.msra.mxu0 %v766
        %937 = vmatpush.bf16.msra.mxu0 %v765
        %938 = vmatpush.bf16.msra.mxu0 %v764
        %939 = vmatpush.bf16.msra.mxu0 %v763
        %940 = vmatpush.bf16.msra.mxu0 %v762
        %941 = vmatpush.bf16.msra.mxu0 %v761
        %942 = vmatpush.bf16.msra.mxu0 %v760
        %943 = vmatpush.bf16.msra.mxu0 %v759
        %944 = vmatmul.bf16.gmra.mxu0 %v920
        %v945 = vpop.f32.mrf.mxu0
        %v946 = vadd.f32 0.0, %v945
        %v947 = vpop.f32.mrf.mxu0
        %v948 = vadd.f32 0.0, %v947
        %949 = vmatmul.bf16.gmra.mxu0 %v921
        %v950 = vpop.f32.mrf.mxu0
        %v951 = vadd.f32 0.0, %v950
        %v952 = vpop.f32.mrf.mxu0
        %v953 = vadd.f32 0.0, %v952
        %954 = vmatmul.bf16.gmra.mxu0 %v922
        %v955 = vpop.f32.mrf.mxu0
        %v956 = vadd.f32 0.0, %v955
        %v957 = vpop.f32.mrf.mxu0
        %v958 = vadd.f32 0.0, %v957
        %959 = vmatmul.bf16.gmra.mxu0 %v923
        %v960 = vpop.f32.mrf.mxu0
        %v961 = vadd.f32 0.0, %v960
        %v962 = vpop.f32.mrf.mxu0
        %v963 = vadd.f32 0.0, %v962
        %964 = vmatmul.bf16.gmra.mxu0 %v924
        %v965 = vpop.f32.mrf.mxu0
        %v966 = vadd.f32 0.0, %v965
        %v967 = vpop.f32.mrf.mxu0
        %v968 = vadd.f32 0.0, %v967
        %969 = vmatmul.bf16.gmra.mxu0 %v925
        %v970 = vpop.f32.mrf.mxu0
        %v971 = vadd.f32 0.0, %v970
        %v972 = vpop.f32.mrf.mxu0
        %v973 = vadd.f32 0.0, %v972
        %974 = vmatmul.bf16.gmra.mxu0 %v926
        %v975 = vpop.f32.mrf.mxu0
        %v976 = vadd.f32 0.0, %v975
        %v977 = vpop.f32.mrf.mxu0
        %v978 = vadd.f32 0.0, %v977
        %979 = vmatmul.bf16.gmra.mxu0 %v927
        %v980 = vpop.f32.mrf.mxu0
        %v981 = vadd.f32 0.0, %v980
        %v982 = vpop.f32.mrf.mxu0
        %v983 = vadd.f32 0.0, %v982
        %984 = vdwg.mxu0
        %v985 = vadd.f32 %v856, %v946
        %v986 = vadd.f32 %v857, %v948
        %v987 = vadd.f32 %v858, %v951
        %v988 = vadd.f32 %v859, %v953
        %v989 = vadd.f32 %v860, %v956
        %v990 = vadd.f32 %v861, %v958
        %v991 = vadd.f32 %v862, %v961
        %v992 = vadd.f32 %v863, %v963
        %v993 = vadd.f32 %v864, %v966
        %v994 = vadd.f32 %v865, %v968
        %v995 = vadd.f32 %v866, %v971
        %v996 = vadd.f32 %v867, %v973
        %v997 = vadd.f32 %v868, %v976
        %v998 = vadd.f32 %v869, %v978
        %v999 = vadd.f32 %v870, %v981
        %v1000 = vadd.f32 %v871, %v983
        %1001 = vst [vmem:[#allocation3] sm:$0xff] %v985
        %1002 = vst [vmem:[#allocation3 + $0x8] sm:$0xff] %v986
        %1003 = vst [vmem:[#allocation3 + $0x10] sm:$0xff] %v987
        %1004 = vst [vmem:[#allocation3 + $0x18] sm:$0xff] %v988
        %1005 = vst [vmem:[#allocation3 + $0x20] sm:$0xff] %v989
        %1006 = vst [vmem:[#allocation3 + $0x28] sm:$0xff] %v990
        %1007 = vst [vmem:[#allocation3 + $0x30] sm:$0xff] %v991
        %1008 = vst [vmem:[#allocation3 + $0x38] sm:$0xff] %v992
        %1009 = vst [vmem:[#allocation3 + $0x40] sm:$0xff] %v993
        %1010 = vst [vmem:[#allocation3 + $0x48] sm:$0xff] %v994
        %1011 = vst [vmem:[#allocation3 + $0x50] sm:$0xff] %v995
        %1012 = vst [vmem:[#allocation3 + $0x58] sm:$0xff] %v996
        %1013 = vst [vmem:[#allocation3 + $0x60] sm:$0xff] %v997
        %1014 = vst [vmem:[#allocation3 + $0x68] sm:$0xff] %v998
        %1015 = vst [vmem:[#allocation3 + $0x70] sm:$0xff] %v999
        %1016 = vst [vmem:[#allocation3 + $0x78] sm:$0xff] %v1000
        %p1017 = scmp.eq.s32.totalorder %s22, 1
        // Predicated region
        $region164: #{run.2} parent=146 // pred_check
          %p1018 = pneg %p1017
        $region165: #{run.2} parent=146 // pred_check_branch
          %1020 = sbr.rel (%p1018) target = $region167
        $region166: #{run.2} parent=146 // pred_region
          %v1021 = vld [vmem:[%s593] sm:$0x1]
          %v1022 = vld [vmem:[#allocation2] sm:$0xff]
          %v1023 = vld [vmem:[#allocation2 + $0x8] sm:$0xff]
          %v1024 = vld [vmem:[#allocation2 + $0x10] sm:$0xff]
          %v1025 = vld [vmem:[#allocation2 + $0x18] sm:$0xff]
          %v1026 = vld [vmem:[#allocation2 + $0x20] sm:$0xff]
          %v1027 = vld [vmem:[#allocation2 + $0x28] sm:$0xff]
          %v1028 = vld [vmem:[#allocation2 + $0x30] sm:$0xff]
          %v1029 = vld [vmem:[#allocation2 + $0x38] sm:$0xff]
          %v1030 = vld [vmem:[#allocation2 + $0x40] sm:$0xff]
          %v1031 = vld [vmem:[#allocation2 + $0x48] sm:$0xff]
          %v1032 = vld [vmem:[#allocation2 + $0x50] sm:$0xff]
          %v1033 = vld [vmem:[#allocation2 + $0x58] sm:$0xff]
          %v1034 = vld [vmem:[#allocation2 + $0x60] sm:$0xff]
          %v1035 = vld [vmem:[#allocation2 + $0x68] sm:$0xff]
          %v1036 = vld [vmem:[#allocation2 + $0x70] sm:$0xff]
          %v1037 = vld [vmem:[#allocation2 + $0x78] sm:$0xff]
          %v1038 = vld [vmem:[#allocation3] sm:$0xff]
          %v1039 = vld [vmem:[#allocation3 + $0x8] sm:$0xff]
          %v1040 = vld [vmem:[#allocation3 + $0x10] sm:$0xff]
          %v1041 = vld [vmem:[#allocation3 + $0x18] sm:$0xff]
          %v1042 = vld [vmem:[#allocation3 + $0x20] sm:$0xff]
          %v1043 = vld [vmem:[#allocation3 + $0x28] sm:$0xff]
          %v1044 = vld [vmem:[#allocation3 + $0x30] sm:$0xff]
          %v1045 = vld [vmem:[#allocation3 + $0x38] sm:$0xff]
          %v1046 = vld [vmem:[#allocation3 + $0x40] sm:$0xff]
          %v1047 = vld [vmem:[#allocation3 + $0x48] sm:$0xff]
          %v1048 = vld [vmem:[#allocation3 + $0x50] sm:$0xff]
          %v1049 = vld [vmem:[#allocation3 + $0x58] sm:$0xff]
          %v1050 = vld [vmem:[#allocation3 + $0x60] sm:$0xff]
          %v1051 = vld [vmem:[#allocation3 + $0x68] sm:$0xff]
          %v1052 = vld [vmem:[#allocation3 + $0x70] sm:$0xff]
          %v1053 = vld [vmem:[#allocation3 + $0x78] sm:$0xff]
          %v1054 = vmul.f32 %v1038, 1.442695
          %v1055 = vpow.pop %v1054
          %v1056 = vmul.f32 %v1039, 1.442695
          %v1057 = vpow.pop %v1056
          %v1058 = vmul.f32 %v1040, 1.442695
          %v1059 = vpow.pop %v1058
          %v1060 = vmul.f32 %v1041, 1.442695
          %v1061 = vpow.pop %v1060
          %v1062 = vmul.f32 %v1042, 1.442695
          %v1063 = vpow.pop %v1062
          %v1064 = vmul.f32 %v1043, 1.442695
          %v1065 = vpow.pop %v1064
          %v1066 = vmul.f32 %v1044, 1.442695
          %v1067 = vpow.pop %v1066
          %v1068 = vmul.f32 %v1045, 1.442695
          %v1069 = vpow.pop %v1068
          %v1070 = vmul.f32 %v1046, 1.442695
          %v1071 = vpow.pop %v1070
          %v1072 = vmul.f32 %v1047, 1.442695
          %v1073 = vpow.pop %v1072
          %v1074 = vmul.f32 %v1048, 1.442695
          %v1075 = vpow.pop %v1074
          %v1076 = vmul.f32 %v1049, 1.442695
          %v1077 = vpow.pop %v1076
          %v1078 = vmul.f32 %v1050, 1.442695
          %v1079 = vpow.pop %v1078
          %v1080 = vmul.f32 %v1051, 1.442695
          %v1081 = vpow.pop %v1080
          %v1082 = vmul.f32 %v1052, 1.442695
          %v1083 = vpow.pop %v1082
          %v1084 = vmul.f32 %v1053, 1.442695
          %v1085 = vpow.pop %v1084
          %v1087 = vperm.slane %v1021, 0
          %v1089 = vmul.f32 %v1055, %v1087
          %v1090 = vmul.f32 %v1057, %v1087
          %v1091 = vmul.f32 %v1059, %v1087
          %v1092 = vmul.f32 %v1061, %v1087
          %v1093 = vmul.f32 %v1063, %v1087
          %v1094 = vmul.f32 %v1065, %v1087
          %v1095 = vmul.f32 %v1067, %v1087
          %v1096 = vmul.f32 %v1069, %v1087
          %v1097 = vmul.f32 %v1071, %v1087
          %v1098 = vmul.f32 %v1073, %v1087
          %v1099 = vmul.f32 %v1075, %v1087
          %v1100 = vmul.f32 %v1077, %v1087
          %v1101 = vmul.f32 %v1079, %v1087
          %v1102 = vmul.f32 %v1081, %v1087
          %v1103 = vmul.f32 %v1083, %v1087
          %v1104 = vmul.f32 %v1085, %v1087
          %v1105 = vadd.f32 %v1022, %v1089
          %v1106 = vadd.f32 %v1023, %v1090
          %v1107 = vadd.f32 %v1024, %v1091
          %v1108 = vadd.f32 %v1025, %v1092
          %v1109 = vadd.f32 %v1026, %v1093
          %v1110 = vadd.f32 %v1027, %v1094
          %v1111 = vadd.f32 %v1028, %v1095
          %v1112 = vadd.f32 %v1029, %v1096
          %v1113 = vadd.f32 %v1030, %v1097
          %v1114 = vadd.f32 %v1031, %v1098
          %v1115 = vadd.f32 %v1032, %v1099
          %v1116 = vadd.f32 %v1033, %v1100
          %v1117 = vadd.f32 %v1034, %v1101
          %v1118 = vadd.f32 %v1035, %v1102
          %v1119 = vadd.f32 %v1036, %v1103
          %v1120 = vadd.f32 %v1037, %v1104
          %v1121 = vpack.c.bf16 %v1105, %v1105
          %v1122 = vpack.c.bf16 %v1106, %v1106
          %v1123 = vpack.c.bf16 %v1107, %v1107
          %v1124 = vpack.c.bf16 %v1108, %v1108
          %v1125 = vpack.c.bf16 %v1109, %v1109
          %v1126 = vpack.c.bf16 %v1110, %v1110
          %v1127 = vpack.c.bf16 %v1111, %v1111
          %v1128 = vpack.c.bf16 %v1112, %v1112
          %v1129 = vpack.c.bf16 %v1113, %v1113
          %v1130 = vpack.c.bf16 %v1114, %v1114
          %v1131 = vpack.c.bf16 %v1115, %v1115
          %v1132 = vpack.c.bf16 %v1116, %v1116
          %v1133 = vpack.c.bf16 %v1117, %v1117
          %v1134 = vpack.c.bf16 %v1118, %v1118
          %v1135 = vpack.c.bf16 %v1119, %v1119
          %v1136 = vpack.c.bf16 %v1120, %v1120
          %1137 = vst [vmem:[%s587] sm:$0xf] %v1121
          %1138 = vst [vmem:[%s587 + $0x4] sm:$0xf] %v1122
          %1139 = vst [vmem:[%s587 + $0x8] sm:$0xf] %v1123
          %1140 = vst [vmem:[%s587 + $0xc] sm:$0xf] %v1124
          %1141 = vst [vmem:[%s587 + $0x10] sm:$0xf] %v1125
          %1142 = vst [vmem:[%s587 + $0x14] sm:$0xf] %v1126
          %1143 = vst [vmem:[%s587 + $0x18] sm:$0xf] %v1127
          %1144 = vst [vmem:[%s587 + $0x1c] sm:$0xf] %v1128
          %1145 = vst [vmem:[%s587 + $0x20] sm:$0xf] %v1129
          %1146 = vst [vmem:[%s587 + $0x24] sm:$0xf] %v1130
          %1147 = vst [vmem:[%s587 + $0x28] sm:$0xf] %v1131
          %1148 = vst [vmem:[%s587 + $0x2c] sm:$0xf] %v1132
          %1149 = vst [vmem:[%s587 + $0x30] sm:$0xf] %v1133
          %1150 = vst [vmem:[%s587 + $0x34] sm:$0xf] %v1134
          %1151 = vst [vmem:[%s587 + $0x38] sm:$0xf] %v1135
          %1152 = vst [vmem:[%s587 + $0x3c] sm:$0xf] %v1136
        $region167: #{run.2} parent=146 // pred_fallthru
          _
        %s1153 = sand.u32 %s154, 1
        %s1154 = sand.u32 %s154, 1
        %s1155 = smul.addr %s1154, 64
        %s1156 = scalar_lea.vmem [#allocation7], %s1155
        // Predicated region
        $region168: #{run.2} parent=146 // pred_check
          %p1157 = pneg %p164
        $region169: #{run.2} parent=146 // pred_check_branch
          %1159 = sbr.rel (%p1157) target = $region171
        $region170: #{run.2} parent=146 // pred_region
          %s1160 = smul.u32 16, %s20
          %s1161 = smul.addr %s1160, 2
          %s1162 = sadd.s32 %s21, %s1161
          %s1163 = smul.addr %s1162, 4
          %s1164 = scalar_lea.vmem %s4, %s1163
          // Predicated region
          $region172: #{run.2} parent=170 // pred_check
            _
          $region173: #{run.2} parent=170 // pred_check_branch
            %1166 = sbr.rel (0) target = $region175
          $region174: #{run.2} parent=170 // pred_region
            // Predicated region
            $region176: #{run.2} parent=174 // pred_check
              _
            $region177: #{run.2} parent=174 // pred_check_branch
              %1168 = sbr.rel target = $region179
            $region178: #{run.2} parent=174 // pred_region
              // Predicated region
              $region191: #{run.2} parent=178 // pred_check
                _
              $region192: #{run.2} parent=178 // pred_check_branch
                %1214 = sbr.rel (0) target = $region194
              $region193: #{run.2} parent=178 // pred_region
                loop: start=0, step=1, limit=1
                $region195: #{run.2} parent=193 // loop_pre_header
                  _
                $region196: #{run.2} parent=193 // loop_header
                  %s1216 = sphi 0, %s1220
                  %p1217 = scmp.ge.s32.totalorder %s1216, 1
                  %s1221 = sphi %s1156, %s1156
                  %s1222 = sphi %s1164, %s1164
                $region197: #{run.2} parent=193 // loop_header_branch
                  %1219 = sbr.rel (%p1217) target = $region201
                $region198: #{run.2} parent=193 // loop_body
                  _
                $region199: #{run.2} parent=193 // loop_footer
                  %s1220 = sadd.s32 1, %s1216
                $region200: #{run.2} parent=193 // loop_footer_branch
                  %1215 = sbr.rel target = $region196
                $region201: #{run.2} parent=193 // loop_exit
                  _
                %s1224 = ssub.s32 16, 1
                loop: start=0, step=1, limit=1
                $region202: #{run.2} parent=193 // loop_pre_header
                  _
                $region203: #{run.2} parent=193 // loop_header
                  %s1226 = sphi 0, %s1230
                  %p1227 = scmp.ge.s32.totalorder %s1226, 1
                  %s1231 = sphi %s1156, %s1156
                  %s1232 = sphi %s1164, %s1164
                $region204: #{run.2} parent=193 // loop_header_branch
                  %1229 = sbr.rel (%p1227) target = $region208
                $region205: #{run.2} parent=193 // loop_body
                  %v1233 = vld [vmem:[%s1231] sm:%s1224]
                  %1234 = vst [vmem:[%s1232] sm:%s1224] %v1233
                  %v1235 = vld [vmem:[%s1231 + $0x4] sm:%s1224]
                  %1236 = vst [vmem:[%s1232 + $0x8] sm:%s1224] %v1235
                  %v1237 = vld [vmem:[%s1231 + $0x8] sm:%s1224]
                  %1238 = vst [vmem:[%s1232 + $0x10] sm:%s1224] %v1237
                  %v1239 = vld [vmem:[%s1231 + $0xc] sm:%s1224]
                  %1240 = vst [vmem:[%s1232 + $0x18] sm:%s1224] %v1239
                  %v1241 = vld [vmem:[%s1231 + $0x10] sm:%s1224]
                  %1242 = vst [vmem:[%s1232 + $0x20] sm:%s1224] %v1241
                  %v1243 = vld [vmem:[%s1231 + $0x14] sm:%s1224]
                  %1244 = vst [vmem:[%s1232 + $0x28] sm:%s1224] %v1243
                  %v1245 = vld [vmem:[%s1231 + $0x18] sm:%s1224]
                  %1246 = vst [vmem:[%s1232 + $0x30] sm:%s1224] %v1245
                  %v1247 = vld [vmem:[%s1231 + $0x1c] sm:%s1224]
                  %1248 = vst [vmem:[%s1232 + $0x38] sm:%s1224] %v1247
                  %v1249 = vld [vmem:[%s1231 + $0x20] sm:%s1224]
                  %1250 = vst [vmem:[%s1232 + $0x40] sm:%s1224] %v1249
                  %v1251 = vld [vmem:[%s1231 + $0x24] sm:%s1224]
                  %1252 = vst [vmem:[%s1232 + $0x48] sm:%s1224] %v1251
                  %v1253 = vld [vmem:[%s1231 + $0x28] sm:%s1224]
                  %1254 = vst [vmem:[%s1232 + $0x50] sm:%s1224] %v1253
                  %v1255 = vld [vmem:[%s1231 + $0x2c] sm:%s1224]
                  %1256 = vst [vmem:[%s1232 + $0x58] sm:%s1224] %v1255
                  %v1257 = vld [vmem:[%s1231 + $0x30] sm:%s1224]
                  %1258 = vst [vmem:[%s1232 + $0x60] sm:%s1224] %v1257
                  %v1259 = vld [vmem:[%s1231 + $0x34] sm:%s1224]
                  %1260 = vst [vmem:[%s1232 + $0x68] sm:%s1224] %v1259
                  %v1261 = vld [vmem:[%s1231 + $0x38] sm:%s1224]
                  %1262 = vst [vmem:[%s1232 + $0x70] sm:%s1224] %v1261
                  %v1263 = vld [vmem:[%s1231 + $0x3c] sm:%s1224]
                  %1264 = vst [vmem:[%s1232 + $0x78] sm:%s1224] %v1263
                $region206: #{run.2} parent=193 // loop_footer
                  %s1230 = sadd.s32 1, %s1226
                $region207: #{run.2} parent=193 // loop_footer_branch
                  %1225 = sbr.rel target = $region203
                $region208: #{run.2} parent=193 // loop_exit
                  _
              $region194: #{run.2} parent=178 // pred_fallthru
                _
            $region179: #{run.2} parent=174 // pred_fallthru
              _
            // Predicated region
            $region180: #{run.2} parent=174 // pred_check
              _
            $region181: #{run.2} parent=174 // pred_check_branch
              %1170 = sbr.rel (0) target = $region183
            $region182: #{run.2} parent=174 // pred_region
              %s1172 = ssub.s32 16, 1
              loop: start=0, step=1, limit=1
              $region184: #{run.2} parent=182 // loop_pre_header
                _
              $region185: #{run.2} parent=182 // loop_header
                %s1174 = sphi 0, %s1178
                %p1175 = scmp.ge.s32.totalorder %s1174, 1
                %s1179 = sphi %s1156, %s1156
                %s1180 = sphi %s1164, %s1164
              $region186: #{run.2} parent=182 // loop_header_branch
                %1177 = sbr.rel (%p1175) target = $region190
              $region187: #{run.2} parent=182 // loop_body
                %v1181 = vld [vmem:[%s1179] sm:%s1172]
                %1182 = vst [vmem:[%s1180] sm:%s1172] %v1181
                %v1183 = vld [vmem:[%s1179 + $0x4] sm:%s1172]
                %1184 = vst [vmem:[%s1180 + $0x8] sm:%s1172] %v1183
                %v1185 = vld [vmem:[%s1179 + $0x8] sm:%s1172]
                %1186 = vst [vmem:[%s1180 + $0x10] sm:%s1172] %v1185
                %v1187 = vld [vmem:[%s1179 + $0xc] sm:%s1172]
                %1188 = vst [vmem:[%s1180 + $0x18] sm:%s1172] %v1187
                %v1189 = vld [vmem:[%s1179 + $0x10] sm:%s1172]
                %1190 = vst [vmem:[%s1180 + $0x20] sm:%s1172] %v1189
                %v1191 = vld [vmem:[%s1179 + $0x14] sm:%s1172]
                %1192 = vst [vmem:[%s1180 + $0x28] sm:%s1172] %v1191
                %v1193 = vld [vmem:[%s1179 + $0x18] sm:%s1172]
                %1194 = vst [vmem:[%s1180 + $0x30] sm:%s1172] %v1193
                %v1195 = vld [vmem:[%s1179 + $0x1c] sm:%s1172]
                %1196 = vst [vmem:[%s1180 + $0x38] sm:%s1172] %v1195
                %v1197 = vld [vmem:[%s1179 + $0x20] sm:%s1172]
                %1198 = vst [vmem:[%s1180 + $0x40] sm:%s1172] %v1197
                %v1199 = vld [vmem:[%s1179 + $0x24] sm:%s1172]
                %1200 = vst [vmem:[%s1180 + $0x48] sm:%s1172] %v1199
                %v1201 = vld [vmem:[%s1179 + $0x28] sm:%s1172]
                %1202 = vst [vmem:[%s1180 + $0x50] sm:%s1172] %v1201
                %v1203 = vld [vmem:[%s1179 + $0x2c] sm:%s1172]
                %1204 = vst [vmem:[%s1180 + $0x58] sm:%s1172] %v1203
                %v1205 = vld [vmem:[%s1179 + $0x30] sm:%s1172]
                %1206 = vst [vmem:[%s1180 + $0x60] sm:%s1172] %v1205
                %v1207 = vld [vmem:[%s1179 + $0x34] sm:%s1172]
                %1208 = vst [vmem:[%s1180 + $0x68] sm:%s1172] %v1207
                %v1209 = vld [vmem:[%s1179 + $0x38] sm:%s1172]
                %1210 = vst [vmem:[%s1180 + $0x70] sm:%s1172] %v1209
                %v1211 = vld [vmem:[%s1179 + $0x3c] sm:%s1172]
                %1212 = vst [vmem:[%s1180 + $0x78] sm:%s1172] %v1211
              $region188: #{run.2} parent=182 // loop_footer
                %s1178 = sadd.s32 1, %s1174
              $region189: #{run.2} parent=182 // loop_footer_branch
                %1173 = sbr.rel target = $region185
              $region190: #{run.2} parent=182 // loop_exit
                _
            $region183: #{run.2} parent=174 // pred_fallthru
              _
          $region175: #{run.2} parent=170 // pred_fallthru
            _
          %1265 = vnop
        $region171: #{run.2} parent=146 // pred_fallthru
          _
      $region147: #{run.2} parent=5 // pred_fallthru
        _
      %p1266 = scmp.le.s32.totalorder 2, %s10
      // Predicated region
      $region209: #{run.2} parent=5 // pred_check
        %p1267 = pneg %p1266
      $region210: #{run.2} parent=5 // pred_check_branch
        %1269 = sbr.rel (%p1267) target = $region212
      $region211: #{run.2} parent=5 // pred_region
        %s1270 = ssub.s32 %s10, 2
        // Predicated region
        $region213: #{run.2} parent=211 // pred_check
          %p1271 = pneg %p170
        $region214: #{run.2} parent=211 // pred_check_branch
          %1273 = sbr.rel (%p1271) target = $region216
        $region215: #{run.2} parent=211 // pred_region
          %s1274 = sand.u32 %s155, 1
          %s1275 = sand.u32 %s155, 1
          %s1276 = smul.addr %s1275, 64
          %s1277 = scalar_lea.vmem [#allocation7], %s1276
        $region216: #{run.2} parent=211 // pred_fallthru
          _
      $region212: #{run.2} parent=5 // pred_fallthru
        _
    $region6: #{run.2} parent=1 // loop_footer
      %s14 = sadd.s32 1, %s10
    $region7: #{run.2} parent=1 // loop_footer_branch
      %9 = sbr.rel target = $region3
    $region8: #{run.2} parent=1 // loop_exit
      _

</llo_original>
